<compile_context>
chip_gen: v7x
topology: tpu7x:2x2x1
jax: 0.10.0
libtpu: 0.0.40
codegen_flags: <defaults>
</compile_context>

<pallas_src>
import numpy as np
import jax
import jax.numpy as jnp
from jax.experimental import pallas as pl
from jax.experimental.pallas import tpu as pltpu


# ----------------------------- tiling plan -----------------------------------
def _plan_tiles(n_rows, tile_n_cap):
    """Rows are tiled along the 128-lane axis in 128-row blocks."""
    LANE = 128
    cap_blocks = max(1, tile_n_cap // LANE)
    blocks = -(-n_rows // LANE)                 # ceil(n_rows / 128)
    n_tiles = -(-blocks // cap_blocks)          # minimum #tiles under the cap
    if blocks >= 2:
        n_tiles = max(n_tiles, 2)               # >=2 grid steps -> both TCs on v7x
    blocks_per_tile = -(-blocks // n_tiles)     # balanced split, minimal padding
    tile_n = blocks_per_tile * LANE
    n_pad = tile_n * n_tiles
    return tile_n, n_pad, n_tiles


# ----------------------------- Pallas kernel --------------------------------
def comm_out_kernel(
    x_ref,                  # (Din, TILE_N)  bf16   rows-on-lanes input
    wl_ref, bl_ref,         # (H, Din) bf16, (H, 1) f32      comm_lin
    wi_ref, bi_ref,         # (3H, H)  bf16, (3H, 1) f32     fused GRU input [r|z|n]
                            #                                 (b_hr/b_hz folded in)
    wh_ref, bh_ref,         # (3H, H)  bf16, (3H, 1) f32     fused GRU hidden [r|z|n]
                            #                                 (bias = [0|0|b_hn])
    wc_ref, bc_ref,         # (H, H)   bf16, (H, 1) f32      conv1d k=1 (pointwise)
    wmu_ref, bmu_ref,       # (C, H)   bf16, (C, 1) f32      comm_out_mu
    prelu_ref,              # (3,) f32 in SMEM: PReLU slopes
    out_ref,                # (L*C, TILE_N) f32
):
    hidden = wl_ref.shape[0]
    comm_shape = wmu_ref.shape[0]
    max_len = out_ref.shape[0] // comm_shape

    a1 = prelu_ref[0]
    a2 = prelu_ref[1]
    a3 = prelu_ref[2]

    bf16 = jnp.bfloat16
    f32 = jnp.float32

    x = x_ref[...]                                          # (Din, N) bf16

    # comm_lin + BatchNorm(identity in eval) + PReLU; lane-dense (H, N)
    y = jnp.dot(wl_ref[...], x, preferred_element_type=f32) + bl_ref[...]
    y = jnp.where(y > 0, y, a1 * y)

    # Fused GRU input-side gates [r|z|n]: one (3H, N) matmul, computed once
    # (the same length-1 input feeds the GRU every outer iteration).
    xg = jnp.dot(wi_ref[...], y.astype(bf16),
                 preferred_element_type=f32) + bi_ref[...]  # (3H, N)
    xg_rz = xg[: 2 * hidden]
    xg_n = xg[2 * hidden:]

    # Hoist weight/bias loads out of the unrolled step loop.
    wh = wh_ref[...]
    bh = bh_ref[...]
    wc = wc_ref[...]
    bc = bc_ref[...]
    wmu = wmu_ref[...]
    bmu = bmu_ref[...]

    tile_n = x.shape[1]
    h = jnp.zeros((hidden, tile_n), f32)

    # TODO(synk): on v6e/v7x the elementwise/EUP path could also run in bf16
    # (~2x transcendental throughput); kept f32 here so the same kernel is
    # efficient on v5e (no bf16 VPU/EUP) and the tolerance stays tight.
    # Static unroll is fine for small max_comm_len (5); switch to
    # lax.fori_loop(..., unroll=True) carrying h if it grows past ~8.
    for step in range(max_len):
        # Fused hidden-side gates: one (3H, N) matmul; bias is [0|0|b_hn].
        hg = jnp.dot(wh, h.astype(bf16), preferred_element_type=f32) + bh
        # ONE sigmoid over the fused 64-row [r|z] slice (r/z split afterwards).
        rz = jax.nn.sigmoid(xg_rz + hg[: 2 * hidden])
        r = rz[:hidden]
        z = rz[hidden:]
        n = jnp.tanh(xg_n + r * hg[2 * hidden:])
        h = (1.0 - z) * n + z * h

        # comm_cnn: BN(id) -> PReLU -> Conv1d(k=1, pointwise) -> BN(id) -> PReLU
        c = jnp.where(h > 0, h, a2 * h)
        c = jnp.dot(wc, c.astype(bf16), preferred_element_type=f32) + bc
        c = jnp.where(c > 0, c, a3 * c)

        # comm_out_mu (actor=False branch); lane-dense, sublane-aligned store.
        pred = jnp.dot(wmu, c.astype(bf16), preferred_element_type=f32) + bmu
        out_ref[step * comm_shape:(step + 1) * comm_shape, :] = pred


# --------------------------- wrapper / param packing --------------------------
def pack_params(params):
    """Fuse/fold weights for the rows-on-lanes kernel; MXU operands in bf16."""
    f32, bf16 = jnp.float32, jnp.bfloat16
    H = params["wl"].shape[0]
    zeros_h = jnp.zeros((1, H), f32)
    # Fold hidden r/z biases into the (once-computed) input-side gate bias.
    bi = jnp.concatenate(
        [params["bir"] + params["bhr"],
         params["biz"] + params["bhz"],
         params["bin"]], axis=1).astype(f32)                       # (1, 3H)
    bh = jnp.concatenate([zeros_h, zeros_h, params["bhn"]], axis=1).astype(f32)
    return {
        "wl": params["wl"].astype(bf16),                           # (H, Din)
        "bl": params["bl"].reshape(-1, 1).astype(f32),             # (H, 1)
        "wi": jnp.concatenate(
            [params["wir"], params["wiz"], params["win"]], axis=0).astype(bf16),  # (3H, H)
        "bi": bi.reshape(-1, 1),                                   # (3H, 1)
        "wh": jnp.concatenate(
            [params["whr"], params["whz"], params["whn"]], axis=0).astype(bf16),  # (3H, H)
        "bh": bh.reshape(-1, 1),                                   # (3H, 1)
        "wc": params["wc"].astype(bf16),                           # (H, H)
        "bc": params["bc"].reshape(-1, 1).astype(f32),             # (H, 1)
        "wmu": params["wmu"].astype(bf16),                         # (C, H)
        "bmu": params["bmu"].reshape(-1, 1).astype(f32),           # (C, 1)
        "prelu": params["prelu"].astype(f32),                      # (3,)
    }


def comm_out_forward(h_w_action, params, max_comm_len, tile_n_cap=2048):
    if h_w_action.ndim == 2:
        h_w_action = h_w_action[:, None, :]
    episodes, steps, d_in = h_w_action.shape
    n_rows = episodes * steps
    hidden = params["wl"].shape[0]
    comm_shape = params["wmu"].shape[0]
    lc = max_comm_len * comm_shape

    p = pack_params(params)
    tile_n, n_pad, n_tiles = _plan_tiles(n_rows, tile_n_cap)

    # Rows-on-lanes: features (Din) on sublanes, rows on the 128-lane axis.
    x_t = h_w_action.reshape(n_rows, d_in).T.astype(jnp.bfloat16)   # (Din, N)
    if n_pad != n_rows:
        x_t = jnp.pad(x_t, ((0, 0), (0, n_pad - n_rows)))

    def const(shape):
        # weights/biases: same block every grid step -> stay resident in VMEM
        return pl.BlockSpec(shape, lambda i: (0, 0))

    in_specs = [
        pl.BlockSpec((d_in, tile_n), lambda i: (0, i)),              # x^T
        const((hidden, d_in)), const((hidden, 1)),                   # wl, bl
        const((3 * hidden, hidden)), const((3 * hidden, 1)),         # wi, bi
        const((3 * hidden, hidden)), const((3 * hidden, 1)),         # wh, bh
        const((hidden, hidden)), const((hidden, 1)),                 # wc, bc
        const((comm_shape, hidden)), const((comm_shape, 1)),         # wmu, bmu
        pl.BlockSpec(memory_space=pltpu.MemorySpace.SMEM),           # prelu slopes
    ]
    out_specs = pl.BlockSpec((lc, tile_n), lambda i: (0, i))

    out = pl.pallas_call(
        comm_out_kernel,
        out_shape=jax.ShapeDtypeStruct((lc, n_pad), jnp.float32),
        grid=(n_tiles,),
        in_specs=in_specs,
        out_specs=out_specs,
        compiler_params=pltpu.CompilerParams(
            dimension_semantics=("parallel",),
        ),
    )(
        x_t,
        p["wl"], p["bl"],
        p["wi"], p["bi"],
        p["wh"], p["bh"],
        p["wc"], p["bc"],
        p["wmu"], p["bmu"],
        p["prelu"],
    )

    # (L*C, n_pad) -> drop padded rows -> (N, L*C) -> (E, S, L, C)
    out = out[:, :n_rows].T.reshape(episodes, steps, max_comm_len, comm_shape)
    return out


# --------------------------- pure-JAX reference (f32) -------------------------
def comm_out_reference(h_w_action, params, max_comm_len):
    if h_w_action.ndim == 2:
        h_w_action = h_w_action[:, None, :]
    episodes, steps, d_in = h_w_action.shape
    x = h_w_action.reshape(episodes * steps, d_in).astype(jnp.float32)
    a1, a2, a3 = [params["prelu"][i] for i in range(3)]

    prelu = lambda v, a: jnp.where(v > 0, v, a * v)

    y = x @ params["wl"].T + params["bl"]
    y = prelu(y, a1)
    xg_r = y @ params["wir"].T + params["bir"]
    xg_z = y @ params["wiz"].T + params["biz"]
    xg_n = y @ params["win"].T + params["bin"]

    h = jnp.zeros((x.shape[0], params["wl"].shape[0]), jnp.float32)
    preds = []
    for _ in range(max_comm_len):
        r = jax.nn.sigmoid(xg_r + h @ params["whr"].T + params["bhr"])
        z = jax.nn.sigmoid(xg_z + h @ params["whz"].T + params["bhz"])
        n = jnp.tanh(xg_n + r * (h @ params["whn"].T + params["bhn"]))
        h = (1.0 - z) * n + z * h
        c = prelu(h, a2)
        c = c @ params["wc"].T + params["bc"]
        c = prelu(c, a3)
        preds.append(c @ params["wmu"].T + params["bmu"])
    out = jnp.stack(preds, axis=1)  # (N, L, C)
    return out.reshape(episodes, steps, max_comm_len, params["wmu"].shape[0])


# ------------------------------ param init -----------------------------------
def init_params(key, d_in, hidden, comm_shape):
    ks = jax.random.split(key, 16)
    nrm = lambda k, shape, scale: (scale * jax.random.normal(k, shape)).astype(jnp.float32)
    sl = 1.0 / np.sqrt(d_in)
    sh = 1.0 / np.sqrt(hidden)
    params = {
        "wl": nrm(ks[0], (hidden, d_in), sl), "bl": nrm(ks[1], (1, hidden), sl),
        "wir": nrm(ks[2], (hidden, hidden), sh), "wiz": nrm(ks[3], (hidden, hidden), sh),
        "win": nrm(ks[4], (hidden, hidden), sh),
        "bir": nrm(ks[5], (1, hidden), sh), "biz": nrm(ks[6], (1, hidden), sh),
        "bin": nrm(ks[7], (1, hidden), sh),
        "whr": nrm(ks[8], (hidden, hidden), sh), "whz": nrm(ks[9], (hidden, hidden), sh),
        "whn": nrm(ks[10], (hidden, hidden), sh),
        "bhr": nrm(ks[11], (1, hidden), sh), "bhz": nrm(ks[12], (1, hidden), sh),
        "bhn": nrm(ks[13], (1, hidden), sh),
        "wc": nrm(ks[14], (hidden, hidden), sh), "bc": jnp.zeros((1, hidden), jnp.float32),
        "wmu": nrm(ks[15], (comm_shape, hidden), sh),
        "bmu": jnp.zeros((1, comm_shape), jnp.float32),
        # PReLU slopes for the three PReLU layers (PyTorch default init is 0.25)
        "prelu": jnp.array([0.25, 0.2, 0.3], jnp.float32),
    }
    return params


# TODO(synk): actor=True branch (Normal sampling + tanh squash + log_prob) is not
# implemented; only the default actor=False prediction path is reproduced.

if __name__ == "__main__":
    # synthetic "args": pvrnn_mtrnn_size=32, encode_action_size=16, hidden_size=32,
    # comm_shape=8, max_comm_len=5
    PVRNN, ACT, HIDDEN, COMM, MAXLEN = 32, 16, 32, 8, 5
    D_IN = PVRNN + ACT

    key = jax.random.PRNGKey(0)
    k_in, k_par, k_big = jax.random.split(key, 3)
    params = init_params(k_par, D_IN, HIDDEN, COMM)

    # bf16 MXU operands (f32 accumulation) -> compare against the f32 reference
    # with relaxed tolerances, as recommended in the perf review.
    RTOL = ATOL = 3e-2

    # Small case (single-tile path).
    h_w_action = jax.random.normal(k_in, (2, 3, D_IN), jnp.float32)
    out = jax.block_until_ready(comm_out_forward(h_w_action, params, MAXLEN))
    ref = comm_out_reference(h_w_action, params, MAXLEN)
    np.testing.assert_allclose(np.asarray(out), np.asarray(ref), rtol=RTOL, atol=ATOL)
    assert out.shape == (2, 3, MAXLEN, COMM)

    # Larger case: exercises row padding + a >=2-step "parallel" grid
    # (both TensorCores on v7x).
    h_big = jax.random.normal(k_big, (7, 40, D_IN), jnp.float32)
    out_b = jax.block_until_ready(comm_out_forward(h_big, params, MAXLEN))
    ref_b = comm_out_reference(h_big, params, MAXLEN)
    np.testing.assert_allclose(np.asarray(out_b), np.asarray(ref_b), rtol=RTOL, atol=ATOL)
    assert out_b.shape == (7, 40, MAXLEN, COMM)

    print("KERNEL_OK")
</pallas_src>

<mosaic_0001>
module attributes {stable_mosaic.version = 11 : i64} {
  func.func @comm_out_kernel(%arg0: i32, %arg1: memref<48x128xbf16, #tpu.memory_space<vmem>>, %arg2: memref<32x48xbf16, #tpu.memory_space<vmem>>, %arg3: memref<32x1xf32, #tpu.memory_space<vmem>>, %arg4: memref<96x32xbf16, #tpu.memory_space<vmem>>, %arg5: memref<96x1xf32, #tpu.memory_space<vmem>>, %arg6: memref<96x32xbf16, #tpu.memory_space<vmem>>, %arg7: memref<96x1xf32, #tpu.memory_space<vmem>>, %arg8: memref<32x32xbf16, #tpu.memory_space<vmem>>, %arg9: memref<32x1xf32, #tpu.memory_space<vmem>>, %arg10: memref<8x32xbf16, #tpu.memory_space<vmem>>, %arg11: memref<8x1xf32, #tpu.memory_space<vmem>>, %arg12: memref<3xf32, #tpu.memory_space<smem>>, %arg13: memref<40x128xf32, #tpu.memory_space<vmem>>) attributes {dimension_semantics = [#tpu.dimension_semantics<parallel>], iteration_bounds = array<i64: 1>, scalar_prefetch = 0 : i64, scratch_operands = 0 : i64, tpu.core_type = #tpu.core_type<tc>, window_params = [{transform_indices = @transform_0, window_bounds = array<i64: 48, 128>}, {pipeline_mode = #tpu.pipeline_mode<synchronous>, transform_indices = @transform_1, window_bounds = array<i64: 32, 48>}, {pipeline_mode = #tpu.pipeline_mode<synchronous>, transform_indices = @transform_2, window_bounds = array<i64: 32, 1>}, {pipeline_mode = #tpu.pipeline_mode<synchronous>, transform_indices = @transform_3, window_bounds = array<i64: 96, 32>}, {pipeline_mode = #tpu.pipeline_mode<synchronous>, transform_indices = @transform_4, window_bounds = array<i64: 96, 1>}, {pipeline_mode = #tpu.pipeline_mode<synchronous>, transform_indices = @transform_5, window_bounds = array<i64: 96, 32>}, {pipeline_mode = #tpu.pipeline_mode<synchronous>, transform_indices = @transform_6, window_bounds = array<i64: 96, 1>}, {pipeline_mode = #tpu.pipeline_mode<synchronous>, transform_indices = @transform_7, window_bounds = array<i64: 32, 32>}, {pipeline_mode = #tpu.pipeline_mode<synchronous>, transform_indices = @transform_8, window_bounds = array<i64: 32, 1>}, {pipeline_mode = #tpu.pipeline_mode<synchronous>, transform_indices = @transform_9, window_bounds = array<i64: 8, 32>}, {pipeline_mode = #tpu.pipeline_mode<synchronous>, transform_indices = @transform_10, window_bounds = array<i64: 8, 1>}, {transform_indices = @transform_11, window_bounds = array<i64: 3>}, {transform_indices = @transform_12, window_bounds = array<i64: 40, 128>}]} {
    %c0 = arith.constant 0 : index
    %0 = memref.load %arg12[%c0] : memref<3xf32, #tpu.memory_space<smem>>
    %c1 = arith.constant 1 : index
    %1 = memref.load %arg12[%c1] : memref<3xf32, #tpu.memory_space<smem>>
    %c2 = arith.constant 2 : index
    %2 = memref.load %arg12[%c2] : memref<3xf32, #tpu.memory_space<smem>>
    %c0_0 = arith.constant 0 : index
    %c0_1 = arith.constant 0 : index
    %3 = vector.load %arg1[%c0_0, %c0_1] : memref<48x128xbf16, #tpu.memory_space<vmem>>, vector<48x128xbf16>
    %c0_2 = arith.constant 0 : index
    %c0_3 = arith.constant 0 : index
    %4 = vector.load %arg2[%c0_2, %c0_3] : memref<32x48xbf16, #tpu.memory_space<vmem>>, vector<32x48xbf16>
    %cst = arith.constant dense<0.000000e+00> : vector<32x128xf32>
    %5 = tpu.matmul %4, %3, %cst {dimension_numbers = #tpu.dot_dimension_numbers<[1], [0], [0], [1], [0, 0, 1, 1], [], []>} : vector<32x48xbf16>, vector<48x128xbf16>, vector<32x128xf32> -> vector<32x128xf32>
    %c0_4 = arith.constant 0 : index
    %c0_5 = arith.constant 0 : index
    %6 = vector.load %arg3[%c0_4, %c0_5] : memref<32x1xf32, #tpu.memory_space<vmem>>, vector<32x1xf32>
    %7 = vector.broadcast %6 : vector<32x1xf32> to vector<32x128xf32>
    %8 = arith.addf %5, %7 : vector<32x128xf32>
    %cst_6 = arith.constant 0.000000e+00 : f32
    %9 = vector.broadcast %cst_6 : f32 to vector<32x128xf32>
    %10 = arith.cmpf ogt, %8, %9 : vector<32x128xf32>
    %11 = vector.broadcast %0 : f32 to vector<32x128xf32>
    %12 = arith.mulf %11, %8 : vector<32x128xf32>
    %13 = arith.select %10, %8, %12 : vector<32x128xi1>, vector<32x128xf32>
    %c0_7 = arith.constant 0 : index
    %c0_8 = arith.constant 0 : index
    %14 = vector.load %arg4[%c0_7, %c0_8] : memref<96x32xbf16, #tpu.memory_space<vmem>>, vector<96x32xbf16>
    %15 = arith.truncf %13 : vector<32x128xf32> to vector<32x128xbf16>
    %cst_9 = arith.constant dense<0.000000e+00> : vector<96x128xf32>
    %16 = tpu.matmul %14, %15, %cst_9 {dimension_numbers = #tpu.dot_dimension_numbers<[1], [0], [0], [1], [0, 0, 1, 1], [], []>} : vector<96x32xbf16>, vector<32x128xbf16>, vector<96x128xf32> -> vector<96x128xf32>
    %c0_10 = arith.constant 0 : index
    %c0_11 = arith.constant 0 : index
    %17 = vector.load %arg5[%c0_10, %c0_11] : memref<96x1xf32, #tpu.memory_space<vmem>>, vector<96x1xf32>
    %18 = vector.broadcast %17 : vector<96x1xf32> to vector<96x128xf32>
    %19 = arith.addf %16, %18 : vector<96x128xf32>
    %20 = vector.extract_strided_slice %19 {offsets = [0, 0], sizes = [64, 128], strides = [1, 1]} : vector<96x128xf32> to vector<64x128xf32>
    %21 = vector.extract_strided_slice %19 {offsets = [64, 0], sizes = [32, 128], strides = [1, 1]} : vector<96x128xf32> to vector<32x128xf32>
    %c0_12 = arith.constant 0 : index
    %c0_13 = arith.constant 0 : index
    %22 = vector.load %arg6[%c0_12, %c0_13] : memref<96x32xbf16, #tpu.memory_space<vmem>>, vector<96x32xbf16>
    %c0_14 = arith.constant 0 : index
    %c0_15 = arith.constant 0 : index
    %23 = vector.load %arg7[%c0_14, %c0_15] : memref<96x1xf32, #tpu.memory_space<vmem>>, vector<96x1xf32>
    %c0_16 = arith.constant 0 : index
    %c0_17 = arith.constant 0 : index
    %24 = vector.load %arg8[%c0_16, %c0_17] : memref<32x32xbf16, #tpu.memory_space<vmem>>, vector<32x32xbf16>
    %c0_18 = arith.constant 0 : index
    %c0_19 = arith.constant 0 : index
    %25 = vector.load %arg9[%c0_18, %c0_19] : memref<32x1xf32, #tpu.memory_space<vmem>>, vector<32x1xf32>
    %c0_20 = arith.constant 0 : index
    %c0_21 = arith.constant 0 : index
    %26 = vector.load %arg10[%c0_20, %c0_21] : memref<8x32xbf16, #tpu.memory_space<vmem>>, vector<8x32xbf16>
    %c0_22 = arith.constant 0 : index
    %c0_23 = arith.constant 0 : index
    %27 = vector.load %arg11[%c0_22, %c0_23] : memref<8x1xf32, #tpu.memory_space<vmem>>, vector<8x1xf32>
    %cst_24 = arith.constant 0.000000e+00 : f32
    %28 = vector.broadcast %cst_24 : f32 to vector<32x128xf32>
    %29 = arith.truncf %28 : vector<32x128xf32> to vector<32x128xbf16>
    %cst_25 = arith.constant dense<0.000000e+00> : vector<96x128xf32>
    %30 = tpu.matmul %22, %29, %cst_25 {dimension_numbers = #tpu.dot_dimension_numbers<[1], [0], [0], [1], [0, 0, 1, 1], [], []>} : vector<96x32xbf16>, vector<32x128xbf16>, vector<96x128xf32> -> vector<96x128xf32>
    %31 = vector.broadcast %23 : vector<96x1xf32> to vector<96x128xf32>
    %32 = arith.addf %30, %31 : vector<96x128xf32>
    %33 = vector.extract_strided_slice %32 {offsets = [0, 0], sizes = [64, 128], strides = [1, 1]} : vector<96x128xf32> to vector<64x128xf32>
    %34 = arith.addf %20, %33 : vector<64x128xf32>
    %35 = arith.negf %34 : vector<64x128xf32>
    %36 = math.exp %35 : vector<64x128xf32>
    %cst_26 = arith.constant 1.000000e+00 : f32
    %37 = vector.broadcast %cst_26 : f32 to vector<64x128xf32>
    %38 = arith.addf %37, %36 : vector<64x128xf32>
    %39 = arith.divf %37, %38 : vector<64x128xf32>
    %40 = vector.extract_strided_slice %39 {offsets = [0, 0], sizes = [32, 128], strides = [1, 1]} : vector<64x128xf32> to vector<32x128xf32>
    %41 = vector.extract_strided_slice %39 {offsets = [32, 0], sizes = [32, 128], strides = [1, 1]} : vector<64x128xf32> to vector<32x128xf32>
    %42 = vector.extract_strided_slice %32 {offsets = [64, 0], sizes = [32, 128], strides = [1, 1]} : vector<96x128xf32> to vector<32x128xf32>
    %43 = arith.mulf %40, %42 : vector<32x128xf32>
    %44 = arith.addf %21, %43 : vector<32x128xf32>
    %45 = math.tanh %44 : vector<32x128xf32>
    %cst_27 = arith.constant 1.000000e+00 : f32
    %46 = vector.broadcast %cst_27 : f32 to vector<32x128xf32>
    %47 = arith.subf %46, %41 : vector<32x128xf32>
    %48 = arith.mulf %47, %45 : vector<32x128xf32>
    %49 = arith.mulf %41, %28 : vector<32x128xf32>
    %50 = arith.addf %48, %49 : vector<32x128xf32>
    %cst_28 = arith.constant 0.000000e+00 : f32
    %51 = vector.broadcast %cst_28 : f32 to vector<32x128xf32>
    %52 = arith.cmpf ogt, %50, %51 : vector<32x128xf32>
    %53 = vector.broadcast %1 : f32 to vector<32x128xf32>
    %54 = arith.mulf %53, %50 : vector<32x128xf32>
    %55 = arith.select %52, %50, %54 : vector<32x128xi1>, vector<32x128xf32>
    %56 = arith.truncf %55 : vector<32x128xf32> to vector<32x128xbf16>
    %cst_29 = arith.constant dense<0.000000e+00> : vector<32x128xf32>
    %57 = tpu.matmul %24, %56, %cst_29 {dimension_numbers = #tpu.dot_dimension_numbers<[1], [0], [0], [1], [0, 0, 1, 1], [], []>} : vector<32x32xbf16>, vector<32x128xbf16>, vector<32x128xf32> -> vector<32x128xf32>
    %58 = vector.broadcast %25 : vector<32x1xf32> to vector<32x128xf32>
    %59 = arith.addf %57, %58 : vector<32x128xf32>
    %cst_30 = arith.constant 0.000000e+00 : f32
    %60 = vector.broadcast %cst_30 : f32 to vector<32x128xf32>
    %61 = arith.cmpf ogt, %59, %60 : vector<32x128xf32>
    %62 = vector.broadcast %2 : f32 to vector<32x128xf32>
    %63 = arith.mulf %62, %59 : vector<32x128xf32>
    %64 = arith.select %61, %59, %63 : vector<32x128xi1>, vector<32x128xf32>
    %65 = arith.truncf %64 : vector<32x128xf32> to vector<32x128xbf16>
    %cst_31 = arith.constant dense<0.000000e+00> : vector<8x128xf32>
    %66 = tpu.matmul %26, %65, %cst_31 {dimension_numbers = #tpu.dot_dimension_numbers<[1], [0], [0], [1], [0, 0, 1, 1], [], []>} : vector<8x32xbf16>, vector<32x128xbf16>, vector<8x128xf32> -> vector<8x128xf32>
    %67 = vector.broadcast %27 : vector<8x1xf32> to vector<8x128xf32>
    %68 = arith.addf %66, %67 : vector<8x128xf32>
    %c0_32 = arith.constant 0 : index
    %c0_33 = arith.constant 0 : index
    %69 = vector.load %arg13[%c0_32, %c0_33] : memref<40x128xf32, #tpu.memory_space<vmem>>, vector<8x128xf32>
    tpu.vector_store %arg13[%c0_32, %c0_33], %68 {strides = array<i32>} : memref<40x128xf32, #tpu.memory_space<vmem>>, vector<8x128xf32>,
    %70 = arith.truncf %50 : vector<32x128xf32> to vector<32x128xbf16>
    %cst_34 = arith.constant dense<0.000000e+00> : vector<96x128xf32>
    %71 = tpu.matmul %22, %70, %cst_34 {dimension_numbers = #tpu.dot_dimension_numbers<[1], [0], [0], [1], [0, 0, 1, 1], [], []>} : vector<96x32xbf16>, vector<32x128xbf16>, vector<96x128xf32> -> vector<96x128xf32>
    %72 = vector.broadcast %23 : vector<96x1xf32> to vector<96x128xf32>
    %73 = arith.addf %71, %72 : vector<96x128xf32>
    %74 = vector.extract_strided_slice %73 {offsets = [0, 0], sizes = [64, 128], strides = [1, 1]} : vector<96x128xf32> to vector<64x128xf32>
    %75 = arith.addf %20, %74 : vector<64x128xf32>
    %76 = arith.negf %75 : vector<64x128xf32>
    %77 = math.exp %76 : vector<64x128xf32>
    %cst_35 = arith.constant 1.000000e+00 : f32
    %78 = vector.broadcast %cst_35 : f32 to vector<64x128xf32>
    %79 = arith.addf %78, %77 : vector<64x128xf32>
    %80 = arith.divf %78, %79 : vector<64x128xf32>
    %81 = vector.extract_strided_slice %80 {offsets = [0, 0], sizes = [32, 128], strides = [1, 1]} : vector<64x128xf32> to vector<32x128xf32>
    %82 = vector.extract_strided_slice %80 {offsets = [32, 0], sizes = [32, 128], strides = [1, 1]} : vector<64x128xf32> to vector<32x128xf32>
    %83 = vector.extract_strided_slice %73 {offsets = [64, 0], sizes = [32, 128], strides = [1, 1]} : vector<96x128xf32> to vector<32x128xf32>
    %84 = arith.mulf %81, %83 : vector<32x128xf32>
    %85 = arith.addf %21, %84 : vector<32x128xf32>
    %86 = math.tanh %85 : vector<32x128xf32>
    %cst_36 = arith.constant 1.000000e+00 : f32
    %87 = vector.broadcast %cst_36 : f32 to vector<32x128xf32>
    %88 = arith.subf %87, %82 : vector<32x128xf32>
    %89 = arith.mulf %88, %86 : vector<32x128xf32>
    %90 = arith.mulf %82, %50 : vector<32x128xf32>
    %91 = arith.addf %89, %90 : vector<32x128xf32>
    %cst_37 = arith.constant 0.000000e+00 : f32
    %92 = vector.broadcast %cst_37 : f32 to vector<32x128xf32>
    %93 = arith.cmpf ogt, %91, %92 : vector<32x128xf32>
    %94 = vector.broadcast %1 : f32 to vector<32x128xf32>
    %95 = arith.mulf %94, %91 : vector<32x128xf32>
    %96 = arith.select %93, %91, %95 : vector<32x128xi1>, vector<32x128xf32>
    %97 = arith.truncf %96 : vector<32x128xf32> to vector<32x128xbf16>
    %cst_38 = arith.constant dense<0.000000e+00> : vector<32x128xf32>
    %98 = tpu.matmul %24, %97, %cst_38 {dimension_numbers = #tpu.dot_dimension_numbers<[1], [0], [0], [1], [0, 0, 1, 1], [], []>} : vector<32x32xbf16>, vector<32x128xbf16>, vector<32x128xf32> -> vector<32x128xf32>
    %99 = vector.broadcast %25 : vector<32x1xf32> to vector<32x128xf32>
    %100 = arith.addf %98, %99 : vector<32x128xf32>
    %cst_39 = arith.constant 0.000000e+00 : f32
    %101 = vector.broadcast %cst_39 : f32 to vector<32x128xf32>
    %102 = arith.cmpf ogt, %100, %101 : vector<32x128xf32>
    %103 = vector.broadcast %2 : f32 to vector<32x128xf32>
    %104 = arith.mulf %103, %100 : vector<32x128xf32>
    %105 = arith.select %102, %100, %104 : vector<32x128xi1>, vector<32x128xf32>
    %106 = arith.truncf %105 : vector<32x128xf32> to vector<32x128xbf16>
    %cst_40 = arith.constant dense<0.000000e+00> : vector<8x128xf32>
    %107 = tpu.matmul %26, %106, %cst_40 {dimension_numbers = #tpu.dot_dimension_numbers<[1], [0], [0], [1], [0, 0, 1, 1], [], []>} : vector<8x32xbf16>, vector<32x128xbf16>, vector<8x128xf32> -> vector<8x128xf32>
    %108 = vector.broadcast %27 : vector<8x1xf32> to vector<8x128xf32>
    %109 = arith.addf %107, %108 : vector<8x128xf32>
    %c8 = arith.constant 8 : index
    %c0_41 = arith.constant 0 : index
    %110 = vector.load %arg13[%c8, %c0_41] : memref<40x128xf32, #tpu.memory_space<vmem>>, vector<8x128xf32>
    tpu.vector_store %arg13[%c8, %c0_41], %109 {strides = array<i32>} : memref<40x128xf32, #tpu.memory_space<vmem>>, vector<8x128xf32>,
    %111 = arith.truncf %91 : vector<32x128xf32> to vector<32x128xbf16>
    %cst_42 = arith.constant dense<0.000000e+00> : vector<96x128xf32>
    %112 = tpu.matmul %22, %111, %cst_42 {dimension_numbers = #tpu.dot_dimension_numbers<[1], [0], [0], [1], [0, 0, 1, 1], [], []>} : vector<96x32xbf16>, vector<32x128xbf16>, vector<96x128xf32> -> vector<96x128xf32>
    %113 = vector.broadcast %23 : vector<96x1xf32> to vector<96x128xf32>
    %114 = arith.addf %112, %113 : vector<96x128xf32>
    %115 = vector.extract_strided_slice %114 {offsets = [0, 0], sizes = [64, 128], strides = [1, 1]} : vector<96x128xf32> to vector<64x128xf32>
    %116 = arith.addf %20, %115 : vector<64x128xf32>
    %117 = arith.negf %116 : vector<64x128xf32>
    %118 = math.exp %117 : vector<64x128xf32>
    %cst_43 = arith.constant 1.000000e+00 : f32
    %119 = vector.broadcast %cst_43 : f32 to vector<64x128xf32>
    %120 = arith.addf %119, %118 : vector<64x128xf32>
    %121 = arith.divf %119, %120 : vector<64x128xf32>
    %122 = vector.extract_strided_slice %121 {offsets = [0, 0], sizes = [32, 128], strides = [1, 1]} : vector<64x128xf32> to vector<32x128xf32>
    %123 = vector.extract_strided_slice %121 {offsets = [32, 0], sizes = [32, 128], strides = [1, 1]} : vector<64x128xf32> to vector<32x128xf32>
    %124 = vector.extract_strided_slice %114 {offsets = [64, 0], sizes = [32, 128], strides = [1, 1]} : vector<96x128xf32> to vector<32x128xf32>
    %125 = arith.mulf %122, %124 : vector<32x128xf32>
    %126 = arith.addf %21, %125 : vector<32x128xf32>
    %127 = math.tanh %126 : vector<32x128xf32>
    %cst_44 = arith.constant 1.000000e+00 : f32
    %128 = vector.broadcast %cst_44 : f32 to vector<32x128xf32>
    %129 = arith.subf %128, %123 : vector<32x128xf32>
    %130 = arith.mulf %129, %127 : vector<32x128xf32>
    %131 = arith.mulf %123, %91 : vector<32x128xf32>
    %132 = arith.addf %130, %131 : vector<32x128xf32>
    %cst_45 = arith.constant 0.000000e+00 : f32
    %133 = vector.broadcast %cst_45 : f32 to vector<32x128xf32>
    %134 = arith.cmpf ogt, %132, %133 : vector<32x128xf32>
    %135 = vector.broadcast %1 : f32 to vector<32x128xf32>
    %136 = arith.mulf %135, %132 : vector<32x128xf32>
    %137 = arith.select %134, %132, %136 : vector<32x128xi1>, vector<32x128xf32>
    %138 = arith.truncf %137 : vector<32x128xf32> to vector<32x128xbf16>
    %cst_46 = arith.constant dense<0.000000e+00> : vector<32x128xf32>
    %139 = tpu.matmul %24, %138, %cst_46 {dimension_numbers = #tpu.dot_dimension_numbers<[1], [0], [0], [1], [0, 0, 1, 1], [], []>} : vector<32x32xbf16>, vector<32x128xbf16>, vector<32x128xf32> -> vector<32x128xf32>
    %140 = vector.broadcast %25 : vector<32x1xf32> to vector<32x128xf32>
    %141 = arith.addf %139, %140 : vector<32x128xf32>
    %cst_47 = arith.constant 0.000000e+00 : f32
    %142 = vector.broadcast %cst_47 : f32 to vector<32x128xf32>
    %143 = arith.cmpf ogt, %141, %142 : vector<32x128xf32>
    %144 = vector.broadcast %2 : f32 to vector<32x128xf32>
    %145 = arith.mulf %144, %141 : vector<32x128xf32>
    %146 = arith.select %143, %141, %145 : vector<32x128xi1>, vector<32x128xf32>
    %147 = arith.truncf %146 : vector<32x128xf32> to vector<32x128xbf16>
    %cst_48 = arith.constant dense<0.000000e+00> : vector<8x128xf32>
    %148 = tpu.matmul %26, %147, %cst_48 {dimension_numbers = #tpu.dot_dimension_numbers<[1], [0], [0], [1], [0, 0, 1, 1], [], []>} : vector<8x32xbf16>, vector<32x128xbf16>, vector<8x128xf32> -> vector<8x128xf32>
    %149 = vector.broadcast %27 : vector<8x1xf32> to vector<8x128xf32>
    %150 = arith.addf %148, %149 : vector<8x128xf32>
    %c16 = arith.constant 16 : index
    %c0_49 = arith.constant 0 : index
    %151 = vector.load %arg13[%c16, %c0_49] : memref<40x128xf32, #tpu.memory_space<vmem>>, vector<8x128xf32>
    tpu.vector_store %arg13[%c16, %c0_49], %150 {strides = array<i32>} : memref<40x128xf32, #tpu.memory_space<vmem>>, vector<8x128xf32>,
    %152 = arith.truncf %132 : vector<32x128xf32> to vector<32x128xbf16>
    %cst_50 = arith.constant dense<0.000000e+00> : vector<96x128xf32>
    %153 = tpu.matmul %22, %152, %cst_50 {dimension_numbers = #tpu.dot_dimension_numbers<[1], [0], [0], [1], [0, 0, 1, 1], [], []>} : vector<96x32xbf16>, vector<32x128xbf16>, vector<96x128xf32> -> vector<96x128xf32>
    %154 = vector.broadcast %23 : vector<96x1xf32> to vector<96x128xf32>
    %155 = arith.addf %153, %154 : vector<96x128xf32>
    %156 = vector.extract_strided_slice %155 {offsets = [0, 0], sizes = [64, 128], strides = [1, 1]} : vector<96x128xf32> to vector<64x128xf32>
    %157 = arith.addf %20, %156 : vector<64x128xf32>
    %158 = arith.negf %157 : vector<64x128xf32>
    %159 = math.exp %158 : vector<64x128xf32>
    %cst_51 = arith.constant 1.000000e+00 : f32
    %160 = vector.broadcast %cst_51 : f32 to vector<64x128xf32>
    %161 = arith.addf %160, %159 : vector<64x128xf32>
    %162 = arith.divf %160, %161 : vector<64x128xf32>
    %163 = vector.extract_strided_slice %162 {offsets = [0, 0], sizes = [32, 128], strides = [1, 1]} : vector<64x128xf32> to vector<32x128xf32>
    %164 = vector.extract_strided_slice %162 {offsets = [32, 0], sizes = [32, 128], strides = [1, 1]} : vector<64x128xf32> to vector<32x128xf32>
    %165 = vector.extract_strided_slice %155 {offsets = [64, 0], sizes = [32, 128], strides = [1, 1]} : vector<96x128xf32> to vector<32x128xf32>
    %166 = arith.mulf %163, %165 : vector<32x128xf32>
    %167 = arith.addf %21, %166 : vector<32x128xf32>
    %168 = math.tanh %167 : vector<32x128xf32>
    %cst_52 = arith.constant 1.000000e+00 : f32
    %169 = vector.broadcast %cst_52 : f32 to vector<32x128xf32>
    %170 = arith.subf %169, %164 : vector<32x128xf32>
    %171 = arith.mulf %170, %168 : vector<32x128xf32>
    %172 = arith.mulf %164, %132 : vector<32x128xf32>
    %173 = arith.addf %171, %172 : vector<32x128xf32>
    %cst_53 = arith.constant 0.000000e+00 : f32
    %174 = vector.broadcast %cst_53 : f32 to vector<32x128xf32>
    %175 = arith.cmpf ogt, %173, %174 : vector<32x128xf32>
    %176 = vector.broadcast %1 : f32 to vector<32x128xf32>
    %177 = arith.mulf %176, %173 : vector<32x128xf32>
    %178 = arith.select %175, %173, %177 : vector<32x128xi1>, vector<32x128xf32>
    %179 = arith.truncf %178 : vector<32x128xf32> to vector<32x128xbf16>
    %cst_54 = arith.constant dense<0.000000e+00> : vector<32x128xf32>
    %180 = tpu.matmul %24, %179, %cst_54 {dimension_numbers = #tpu.dot_dimension_numbers<[1], [0], [0], [1], [0, 0, 1, 1], [], []>} : vector<32x32xbf16>, vector<32x128xbf16>, vector<32x128xf32> -> vector<32x128xf32>
    %181 = vector.broadcast %25 : vector<32x1xf32> to vector<32x128xf32>
    %182 = arith.addf %180, %181 : vector<32x128xf32>
    %cst_55 = arith.constant 0.000000e+00 : f32
    %183 = vector.broadcast %cst_55 : f32 to vector<32x128xf32>
    %184 = arith.cmpf ogt, %182, %183 : vector<32x128xf32>
    %185 = vector.broadcast %2 : f32 to vector<32x128xf32>
    %186 = arith.mulf %185, %182 : vector<32x128xf32>
    %187 = arith.select %184, %182, %186 : vector<32x128xi1>, vector<32x128xf32>
    %188 = arith.truncf %187 : vector<32x128xf32> to vector<32x128xbf16>
    %cst_56 = arith.constant dense<0.000000e+00> : vector<8x128xf32>
    %189 = tpu.matmul %26, %188, %cst_56 {dimension_numbers = #tpu.dot_dimension_numbers<[1], [0], [0], [1], [0, 0, 1, 1], [], []>} : vector<8x32xbf16>, vector<32x128xbf16>, vector<8x128xf32> -> vector<8x128xf32>
    %190 = vector.broadcast %27 : vector<8x1xf32> to vector<8x128xf32>
    %191 = arith.addf %189, %190 : vector<8x128xf32>
    %c24 = arith.constant 24 : index
    %c0_57 = arith.constant 0 : index
    %192 = vector.load %arg13[%c24, %c0_57] : memref<40x128xf32, #tpu.memory_space<vmem>>, vector<8x128xf32>
    tpu.vector_store %arg13[%c24, %c0_57], %191 {strides = array<i32>} : memref<40x128xf32, #tpu.memory_space<vmem>>, vector<8x128xf32>,
    %193 = arith.truncf %173 : vector<32x128xf32> to vector<32x128xbf16>
    %cst_58 = arith.constant dense<0.000000e+00> : vector<96x128xf32>
    %194 = tpu.matmul %22, %193, %cst_58 {dimension_numbers = #tpu.dot_dimension_numbers<[1], [0], [0], [1], [0, 0, 1, 1], [], []>} : vector<96x32xbf16>, vector<32x128xbf16>, vector<96x128xf32> -> vector<96x128xf32>
    %195 = vector.broadcast %23 : vector<96x1xf32> to vector<96x128xf32>
    %196 = arith.addf %194, %195 : vector<96x128xf32>
    %197 = vector.extract_strided_slice %196 {offsets = [0, 0], sizes = [64, 128], strides = [1, 1]} : vector<96x128xf32> to vector<64x128xf32>
    %198 = arith.addf %20, %197 : vector<64x128xf32>
    %199 = arith.negf %198 : vector<64x128xf32>
    %200 = math.exp %199 : vector<64x128xf32>
    %cst_59 = arith.constant 1.000000e+00 : f32
    %201 = vector.broadcast %cst_59 : f32 to vector<64x128xf32>
    %202 = arith.addf %201, %200 : vector<64x128xf32>
    %203 = arith.divf %201, %202 : vector<64x128xf32>
    %204 = vector.extract_strided_slice %203 {offsets = [0, 0], sizes = [32, 128], strides = [1, 1]} : vector<64x128xf32> to vector<32x128xf32>
    %205 = vector.extract_strided_slice %203 {offsets = [32, 0], sizes = [32, 128], strides = [1, 1]} : vector<64x128xf32> to vector<32x128xf32>
    %206 = vector.extract_strided_slice %196 {offsets = [64, 0], sizes = [32, 128], strides = [1, 1]} : vector<96x128xf32> to vector<32x128xf32>
    %207 = arith.mulf %204, %206 : vector<32x128xf32>
    %208 = arith.addf %21, %207 : vector<32x128xf32>
    %209 = math.tanh %208 : vector<32x128xf32>
    %cst_60 = arith.constant 1.000000e+00 : f32
    %210 = vector.broadcast %cst_60 : f32 to vector<32x128xf32>
    %211 = arith.subf %210, %205 : vector<32x128xf32>
    %212 = arith.mulf %211, %209 : vector<32x128xf32>
    %213 = arith.mulf %205, %173 : vector<32x128xf32>
    %214 = arith.addf %212, %213 : vector<32x128xf32>
    %cst_61 = arith.constant 0.000000e+00 : f32
    %215 = vector.broadcast %cst_61 : f32 to vector<32x128xf32>
    %216 = arith.cmpf ogt, %214, %215 : vector<32x128xf32>
    %217 = vector.broadcast %1 : f32 to vector<32x128xf32>
    %218 = arith.mulf %217, %214 : vector<32x128xf32>
    %219 = arith.select %216, %214, %218 : vector<32x128xi1>, vector<32x128xf32>
    %220 = arith.truncf %219 : vector<32x128xf32> to vector<32x128xbf16>
    %cst_62 = arith.constant dense<0.000000e+00> : vector<32x128xf32>
    %221 = tpu.matmul %24, %220, %cst_62 {dimension_numbers = #tpu.dot_dimension_numbers<[1], [0], [0], [1], [0, 0, 1, 1], [], []>} : vector<32x32xbf16>, vector<32x128xbf16>, vector<32x128xf32> -> vector<32x128xf32>
    %222 = vector.broadcast %25 : vector<32x1xf32> to vector<32x128xf32>
    %223 = arith.addf %221, %222 : vector<32x128xf32>
    %cst_63 = arith.constant 0.000000e+00 : f32
    %224 = vector.broadcast %cst_63 : f32 to vector<32x128xf32>
    %225 = arith.cmpf ogt, %223, %224 : vector<32x128xf32>
    %226 = vector.broadcast %2 : f32 to vector<32x128xf32>
    %227 = arith.mulf %226, %223 : vector<32x128xf32>
    %228 = arith.select %225, %223, %227 : vector<32x128xi1>, vector<32x128xf32>
    %229 = arith.truncf %228 : vector<32x128xf32> to vector<32x128xbf16>
    %cst_64 = arith.constant dense<0.000000e+00> : vector<8x128xf32>
    %230 = tpu.matmul %26, %229, %cst_64 {dimension_numbers = #tpu.dot_dimension_numbers<[1], [0], [0], [1], [0, 0, 1, 1], [], []>} : vector<8x32xbf16>, vector<32x128xbf16>, vector<8x128xf32> -> vector<8x128xf32>
    %231 = vector.broadcast %27 : vector<8x1xf32> to vector<8x128xf32>
    %232 = arith.addf %230, %231 : vector<8x128xf32>
    %c32 = arith.constant 32 : index
    %c0_65 = arith.constant 0 : index
    %233 = vector.load %arg13[%c32, %c0_65] : memref<40x128xf32, #tpu.memory_space<vmem>>, vector<8x128xf32>
    tpu.vector_store %arg13[%c32, %c0_65], %232 {strides = array<i32>} : memref<40x128xf32, #tpu.memory_space<vmem>>, vector<8x128xf32>,
    return
  }
  func.func @transform_0(%arg0: i32) -> (i32, i32) {
    %c0_i32 = arith.constant 0 : i32
    %c0_i32_0 = arith.constant 0 : i32
    return %c0_i32, %arg0 : i32, i32
  }
  func.func @transform_1(%arg0: i32) -> (i32, i32) {
    %c0_i32 = arith.constant 0 : i32
    %c0_i32_0 = arith.constant 0 : i32
    %c0_i32_1 = arith.constant 0 : i32
    return %c0_i32, %c0_i32_0 : i32, i32
  }
  func.func @transform_2(%arg0: i32) -> (i32, i32) {
    %c0_i32 = arith.constant 0 : i32
    %c0_i32_0 = arith.constant 0 : i32
    %c0_i32_1 = arith.constant 0 : i32
    return %c0_i32, %c0_i32_0 : i32, i32
  }
  func.func @transform_3(%arg0: i32) -> (i32, i32) {
    %c0_i32 = arith.constant 0 : i32
    %c0_i32_0 = arith.constant 0 : i32
    %c0_i32_1 = arith.constant 0 : i32
    return %c0_i32, %c0_i32_0 : i32, i32
  }
  func.func @transform_4(%arg0: i32) -> (i32, i32) {
    %c0_i32 = arith.constant 0 : i32
    %c0_i32_0 = arith.constant 0 : i32
    %c0_i32_1 = arith.constant 0 : i32
    return %c0_i32, %c0_i32_0 : i32, i32
  }
  func.func @transform_5(%arg0: i32) -> (i32, i32) {
    %c0_i32 = arith.constant 0 : i32
    %c0_i32_0 = arith.constant 0 : i32
    %c0_i32_1 = arith.constant 0 : i32
    return %c0_i32, %c0_i32_0 : i32, i32
  }
  func.func @transform_6(%arg0: i32) -> (i32, i32) {
    %c0_i32 = arith.constant 0 : i32
    %c0_i32_0 = arith.constant 0 : i32
    %c0_i32_1 = arith.constant 0 : i32
    return %c0_i32, %c0_i32_0 : i32, i32
  }
  func.func @transform_7(%arg0: i32) -> (i32, i32) {
    %c0_i32 = arith.constant 0 : i32
    %c0_i32_0 = arith.constant 0 : i32
    %c0_i32_1 = arith.constant 0 : i32
    return %c0_i32, %c0_i32_0 : i32, i32
  }
  func.func @transform_8(%arg0: i32) -> (i32, i32) {
    %c0_i32 = arith.constant 0 : i32
    %c0_i32_0 = arith.constant 0 : i32
    %c0_i32_1 = arith.constant 0 : i32
    return %c0_i32, %c0_i32_0 : i32, i32
  }
  func.func @transform_9(%arg0: i32) -> (i32, i32) {
    %c0_i32 = arith.constant 0 : i32
    %c0_i32_0 = arith.constant 0 : i32
    %c0_i32_1 = arith.constant 0 : i32
    return %c0_i32, %c0_i32_0 : i32, i32
  }
  func.func @transform_10(%arg0: i32) -> (i32, i32) {
    %c0_i32 = arith.constant 0 : i32
    %c0_i32_0 = arith.constant 0 : i32
    %c0_i32_1 = arith.constant 0 : i32
    return %c0_i32, %c0_i32_0 : i32, i32
  }
  func.func @transform_11(%arg0: i32) -> i32 {
    %c0_i32 = arith.constant 0 : i32
    %c0_i32_0 = arith.constant 0 : i32
    return %c0_i32 : i32
  }
  func.func @transform_12(%arg0: i32) -> (i32, i32) {
    %c0_i32 = arith.constant 0 : i32
    %c0_i32_0 = arith.constant 0 : i32
    return %c0_i32, %arg0 : i32, i32
  }
}

</mosaic_0001>

<llo_original>
// kernel: tpu_custom_call.1
$region0: #{tpu_custom_call.1}
  #allocation0 [shape = 'u32[]', space=smem, size = 0x4, offset = 0x4, fixed_abs, tag = 'smem constant byte address 0x4 - core index']
  #allocation1 [shape = 'u32[144,128]{1,0:T(1,128)}', space=vmem, size = 0x12000, scoped, tag = 'internal scratch']
  %s0 = inlined_call_operand.vmem [shape: bf16[48,128], index: 0, kind: input, shape index: {}]
  %s1 = inlined_call_operand.vmem [shape: bf16[32,48], index: 1, kind: input, shape index: {}]
  %s2 = inlined_call_operand.vmem [shape: f32[32,1], index: 2, kind: input, shape index: {}]
  %s3 = inlined_call_operand.vmem [shape: bf16[96,32], index: 3, kind: input, shape index: {}]
  %s4 = inlined_call_operand.vmem [shape: f32[96,1], index: 4, kind: input, shape index: {}]
  %s5 = inlined_call_operand.vmem [shape: bf16[96,32], index: 5, kind: input, shape index: {}]
  %s6 = inlined_call_operand.vmem [shape: f32[96,1], index: 6, kind: input, shape index: {}]
  %s7 = inlined_call_operand.vmem [shape: bf16[32,32], index: 7, kind: input, shape index: {}]
  %s8 = inlined_call_operand.vmem [shape: f32[32,1], index: 8, kind: input, shape index: {}]
  %s9 = inlined_call_operand.vmem [shape: bf16[8,32], index: 9, kind: input, shape index: {}]
  %s10 = inlined_call_operand.vmem [shape: f32[8,1], index: 10, kind: input, shape index: {}]
  %s11 = inlined_call_operand.vmem [shape: f32[3], index: 11, kind: input, shape index: {}]
  %s12 = inlined_call_operand.hbm [shape: f32[40,128], index: 12, kind: output, shape index: {}]
  %s13 = sld [smem:[#allocation0]]
  $region62: #{tpu_custom_call.1} parent=0
    _
  %s15 = ssub.s32 1, %s13
  %s16 = scalar_select 0, %s15, %s13
  $region1: #{tpu_custom_call.1} parent=0
    #allocation2 [shape = 'u8[512]{0}', space=smem, size = 0x200, scoped, tag = 'input window, operand 11, single buffered']
    #allocation3 [shape = 's32[1]{0}', space=sflag, size = 0x4, scoped, tag = 'scoped memory for tpu_custom_call.1']
    #allocation4 [shape = 's32[1]{0}', space=sflag, size = 0x4, scoped, tag = 'scoped memory for tpu_custom_call.1']
    #allocation5 [shape = 'u8[20480]{0}', space=vmem, size = 0x5000, scoped, tag = 'output window, operand 0, single buffered']
    %17 = vsyncpa [#allocation4], 0
    %18 = vsyncpa [#allocation3], 0
    // Predicated region
    $region2: #{tpu_custom_call.1} parent=1 // pred_check
      _
    $region3: #{tpu_custom_call.1} parent=1 // pred_check_branch
      %20 = sbr.rel (0) target = $region5
    $region4: #{tpu_custom_call.1} parent=1 // pred_region
      _
    $region5: #{tpu_custom_call.1} parent=1 // pred_fallthru
      _
    // Predicated region
    $region6: #{tpu_custom_call.1} parent=1 // pred_check
      _
    $region7: #{tpu_custom_call.1} parent=1 // pred_check_branch
      %22 = sbr.rel (0) target = $region9
    $region8: #{tpu_custom_call.1} parent=1 // pred_region
      _
    $region9: #{tpu_custom_call.1} parent=1 // pred_fallthru
      _
    // Predicated region
    $region10: #{tpu_custom_call.1} parent=1 // pred_check
      _
    $region11: #{tpu_custom_call.1} parent=1 // pred_check_branch
      %24 = sbr.rel (0) target = $region13
    $region12: #{tpu_custom_call.1} parent=1 // pred_region
      _
    $region13: #{tpu_custom_call.1} parent=1 // pred_fallthru
      _
    // Predicated region
    $region14: #{tpu_custom_call.1} parent=1 // pred_check
      _
    $region15: #{tpu_custom_call.1} parent=1 // pred_check_branch
      %26 = sbr.rel (0) target = $region17
    $region16: #{tpu_custom_call.1} parent=1 // pred_region
      _
    $region17: #{tpu_custom_call.1} parent=1 // pred_fallthru
      _
    // Predicated region
    $region18: #{tpu_custom_call.1} parent=1 // pred_check
      _
    $region19: #{tpu_custom_call.1} parent=1 // pred_check_branch
      %28 = sbr.rel (0) target = $region21
    $region20: #{tpu_custom_call.1} parent=1 // pred_region
      _
    $region21: #{tpu_custom_call.1} parent=1 // pred_fallthru
      _
    // Predicated region
    $region22: #{tpu_custom_call.1} parent=1 // pred_check
      _
    $region23: #{tpu_custom_call.1} parent=1 // pred_check_branch
      %30 = sbr.rel (0) target = $region25
    $region24: #{tpu_custom_call.1} parent=1 // pred_region
      _
    $region25: #{tpu_custom_call.1} parent=1 // pred_fallthru
      _
    // Predicated region
    $region26: #{tpu_custom_call.1} parent=1 // pred_check
      _
    $region27: #{tpu_custom_call.1} parent=1 // pred_check_branch
      %32 = sbr.rel (0) target = $region29
    $region28: #{tpu_custom_call.1} parent=1 // pred_region
      _
    $region29: #{tpu_custom_call.1} parent=1 // pred_fallthru
      _
    // Predicated region
    $region30: #{tpu_custom_call.1} parent=1 // pred_check
      _
    $region31: #{tpu_custom_call.1} parent=1 // pred_check_branch
      %34 = sbr.rel (0) target = $region33
    $region32: #{tpu_custom_call.1} parent=1 // pred_region
      _
    $region33: #{tpu_custom_call.1} parent=1 // pred_fallthru
      _
    // Predicated region
    $region34: #{tpu_custom_call.1} parent=1 // pred_check
      _
    $region35: #{tpu_custom_call.1} parent=1 // pred_check_branch
      %36 = sbr.rel (0) target = $region37
    $region36: #{tpu_custom_call.1} parent=1 // pred_region
      _
    $region37: #{tpu_custom_call.1} parent=1 // pred_fallthru
      _
    // Predicated region
    $region38: #{tpu_custom_call.1} parent=1 // pred_check
      _
    $region39: #{tpu_custom_call.1} parent=1 // pred_check_branch
      %38 = sbr.rel (0) target = $region41
    $region40: #{tpu_custom_call.1} parent=1 // pred_region
      _
    $region41: #{tpu_custom_call.1} parent=1 // pred_fallthru
      _
    // Predicated region
    $region42: #{tpu_custom_call.1} parent=1 // pred_check
      _
    $region43: #{tpu_custom_call.1} parent=1 // pred_check_branch
      %40 = sbr.rel (0) target = $region45
    $region44: #{tpu_custom_call.1} parent=1 // pred_region
      _
    $region45: #{tpu_custom_call.1} parent=1 // pred_fallthru
      _
    // Predicated region
    $region46: #{tpu_custom_call.1} parent=1 // pred_check
      _
    $region47: #{tpu_custom_call.1} parent=1 // pred_check_branch
      %42 = sbr.rel (0) target = $region49
    $region48: #{tpu_custom_call.1} parent=1 // pred_region
      %s44 = ssub.s32 16, 16
      %45 = vsyncadd [#allocation4], %s44
      %s47 = sshll.u32 %s11, 4
      %s48 = int_to_ptr.vmem [resolvable:$true] %s47
      %50 = dma.vmem_to_smem %s48, 16, [#allocation2], [#allocation4]
    $region49: #{tpu_custom_call.1} parent=1 // pred_fallthru
      _
    // Predicated region
    $region50: #{tpu_custom_call.1} parent=1 // pred_check
      _
    $region51: #{tpu_custom_call.1} parent=1 // pred_check_branch
      %52 = sbr.rel (0) target = $region53
    $region52: #{tpu_custom_call.1} parent=1 // pred_region
      %53 = dma.done [#allocation4], 16
    $region53: #{tpu_custom_call.1} parent=1 // pred_fallthru
      _
    %54 = sfence
    %s56 = sld [smem:[#allocation2]]
    %s57 = sld [smem:[#allocation2 + $0x1]]
    %s58 = sld [smem:[#allocation2 + $0x2]]
    %v59 = vld [vmem:[%s0] sm:$0xf]
    %v60 = vld [vmem:[%s0 + $0x4] sm:$0xf]
    %v61 = vld [vmem:[%s0 + $0x8] sm:$0xf]
    %v62 = vld [vmem:[%s0 + $0xc] sm:$0xf]
    %v63 = vld [vmem:[%s0 + $0x10] sm:$0xf]
    %v64 = vld [vmem:[%s0 + $0x14] sm:$0xf]
    %v65 = vld [vmem:[%s1] sm:$0xf]
    %v66 = vld [vmem:[%s1 + $0x4] sm:$0xf]
    %v67 = vld [vmem:[%s1 + $0x8] sm:$0xf]
    %v68 = vld [vmem:[%s1 + $0xc] sm:$0xf]
    %v69 = vld [vmem:[%s2] sm:$0xff]
    %v70 = vld [vmem:[%s2 + $0x8] sm:$0xff]
    %v71 = vld [vmem:[%s2 + $0x10] sm:$0xff]
    %v72 = vld [vmem:[%s2 + $0x18] sm:$0xff]
    %74 = vset.pattern.permute.xlu0 0
    %75 = vperm.xlu0 %74, %v69
    %v76 = vpop.permute.xlu0 %75
    %79 = vset.pattern.permute.xlu0 0
    %80 = vperm.xlu0 %79, %v70
    %v81 = vpop.permute.xlu0 %80
    %84 = vset.pattern.permute.xlu0 0
    %85 = vperm.xlu0 %84, %v71
    %v86 = vpop.permute.xlu0 %85
    %89 = vset.pattern.permute.xlu0 0
    %90 = vperm.xlu0 %89, %v72
    %v91 = vpop.permute.xlu0 %90
    %v97 = vunpack.c.l.b16 %v65
    %v98 = vunpack.c.l.b16 %v66
    %v99 = vunpack.c.l.b16 %v67
    %v100 = vunpack.c.l.b16 %v68
    %v101 = vpack.c.b16 %v98, %v97
    %v102 = vpack.c.b16 %v100, %v99
    %v109 = vunpack.c.l.b16 %v59
    %v110 = vunpack.c.l.b16 %v60
    %v111 = vunpack.c.l.b16 %v61
    %v112 = vunpack.c.l.b16 %v62
    %v113 = vunpack.c.l.b16 %v63
    %v114 = vunpack.c.l.b16 %v64
    %v115 = vpack.c.b16 %v110, %v109
    %v116 = vpack.c.b16 %v112, %v111
    %v117 = vpack.c.b16 %v114, %v113
    %vm121 = vcmask 392192
    %v123 = vsel %vm121, %v101, 0
    %v126 = vsel %vm121, %v102, 0
    %128 = vmatprep.subr.bf16.mxu0 0
    %129 = vmatpush1.bf16.msra.mxu0 %v115
    %130 = vmatprep.subr.bf16.mxu0 0
    %131 = vmatpush1.bf16.msra.mxu0 %v116
    %132 = vmatprep.subr.bf16.mxu0 0
    %133 = vmatpush1.bf16.msra.mxu0 %v117
    %134 = vmatprep.subr.bf16.mxu0 0
    %135 = vmatpush1.bf16.msra.mxu0 0
    %136 = vmatprep.subr.bf16.mxu0 0
    %137 = vmatpush1.bf16.msra.mxu0 0
    %138 = vmatprep.subr.bf16.mxu0 0
    %139 = vmatpush1.bf16.msra.mxu0 0
    %140 = vmatprep.subr.bf16.mxu0 0
    %141 = vmatpush1.bf16.msra.mxu0 0
    %142 = vmatprep.subr.bf16.mxu0 0
    %143 = vmatpush1.bf16.msra.mxu0 0
    %144 = vmatprep.subr.bf16.mxu0 0
    %145 = vmatpush1.bf16.msra.mxu0 0
    %146 = vmatprep.subr.bf16.mxu0 0
    %147 = vmatpush1.bf16.msra.mxu0 0
    %148 = vmatprep.subr.bf16.mxu0 0
    %149 = vmatpush1.bf16.msra.mxu0 0
    %150 = vmatprep.subr.bf16.mxu0 0
    %151 = vmatpush1.bf16.msra.mxu0 0
    %152 = vmatprep.subr.bf16.mxu0 0
    %153 = vmatpush1.bf16.msra.mxu0 0
    %154 = vmatprep.subr.bf16.mxu0 0
    %155 = vmatpush1.bf16.msra.mxu0 0
    %156 = vmatprep.subr.bf16.mxu0 0
    %157 = vmatpush1.bf16.msra.mxu0 0
    %158 = vmatprep.subr.bf16.mxu0 0
    %159 = vmatpush1.bf16.msra.mxu0 0
    %160 = vmatprep.mubr.bf16.mxu0 0
    %161 = vmatmul.mubr.bf16.gmra.mrb[0].mxu0 %v123
    %v162 = vpop.f32.mrb[0].mxu0
    %v163 = vadd.f32 %v76, %v162
    %v164 = vpop.f32.mrb[0].mxu0
    %v165 = vpop.f32.mrb[0].mxu0
    %v166 = vadd.f32 %v81, %v165
    %v167 = vpop.f32.mrb[0].mxu0
    %168 = vmatprep.mubr.bf16.mxu0 0
    %169 = vmatmul.mubr.bf16.gmra.mrb[0].mxu0 %v126
    %v170 = vpop.f32.mrb[0].mxu0
    %v171 = vadd.f32 %v86, %v170
    %v172 = vpop.f32.mrb[0].mxu0
    %v173 = vpop.f32.mrb[0].mxu0
    %v174 = vadd.f32 %v91, %v173
    %v175 = vpop.f32.mrb[0].mxu0
    %176 = vdwg.mxu0
    %vm177 = vcmp.gt.f32.partialorder %v163, 0.0
    %vm178 = vcmp.gt.f32.partialorder %v166, 0.0
    %vm179 = vcmp.gt.f32.partialorder %v171, 0.0
    %vm180 = vcmp.gt.f32.partialorder %v174, 0.0
    %v181 = vstv %s56
    %v182 = vmul.f32 %v181, %v163
    %v183 = vmul.f32 %v181, %v166
    %v184 = vmul.f32 %v181, %v171
    %v185 = vmul.f32 %v181, %v174
    %v186 = vsel %vm177, %v163, %v182
    %v187 = vsel %vm178, %v166, %v183
    %v188 = vsel %vm179, %v171, %v184
    %v189 = vsel %vm180, %v174, %v185
    %v190 = vld [vmem:[%s3] sm:$0xf]
    %v191 = vld [vmem:[%s3 + $0x4] sm:$0xf]
    %v192 = vld [vmem:[%s3 + $0x8] sm:$0xf]
    %v193 = vld [vmem:[%s3 + $0xc] sm:$0xf]
    %v194 = vld [vmem:[%s3 + $0x10] sm:$0xf]
    %v195 = vld [vmem:[%s3 + $0x14] sm:$0xf]
    %v196 = vld [vmem:[%s3 + $0x18] sm:$0xf]
    %v197 = vld [vmem:[%s3 + $0x1c] sm:$0xf]
    %v198 = vld [vmem:[%s3 + $0x20] sm:$0xf]
    %v199 = vld [vmem:[%s3 + $0x24] sm:$0xf]
    %v200 = vld [vmem:[%s3 + $0x28] sm:$0xf]
    %v201 = vld [vmem:[%s3 + $0x2c] sm:$0xf]
    %v202 = vpack.c.bf16 %v187, %v186
    %v203 = vpack.c.bf16 %v189, %v188
    %v204 = vld [vmem:[%s4] sm:$0xff]
    %v205 = vld [vmem:[%s4 + $0x8] sm:$0xff]
    %v206 = vld [vmem:[%s4 + $0x10] sm:$0xff]
    %v207 = vld [vmem:[%s4 + $0x18] sm:$0xff]
    %v208 = vld [vmem:[%s4 + $0x20] sm:$0xff]
    %v209 = vld [vmem:[%s4 + $0x28] sm:$0xff]
    %v210 = vld [vmem:[%s4 + $0x30] sm:$0xff]
    %v211 = vld [vmem:[%s4 + $0x38] sm:$0xff]
    %v212 = vld [vmem:[%s4 + $0x40] sm:$0xff]
    %v213 = vld [vmem:[%s4 + $0x48] sm:$0xff]
    %v214 = vld [vmem:[%s4 + $0x50] sm:$0xff]
    %v215 = vld [vmem:[%s4 + $0x58] sm:$0xff]
    %217 = vset.pattern.permute.xlu0 0
    %218 = vperm.xlu0 %217, %v204
    %v219 = vpop.permute.xlu0 %218
    %222 = vset.pattern.permute.xlu0 0
    %223 = vperm.xlu0 %222, %v205
    %v224 = vpop.permute.xlu0 %223
    %227 = vset.pattern.permute.xlu0 0
    %228 = vperm.xlu0 %227, %v206
    %v229 = vpop.permute.xlu0 %228
    %232 = vset.pattern.permute.xlu0 0
    %233 = vperm.xlu0 %232, %v207
    %v234 = vpop.permute.xlu0 %233
    %237 = vset.pattern.permute.xlu0 0
    %238 = vperm.xlu0 %237, %v208
    %v239 = vpop.permute.xlu0 %238
    %242 = vset.pattern.permute.xlu0 0
    %243 = vperm.xlu0 %242, %v209
    %v244 = vpop.permute.xlu0 %243
    %247 = vset.pattern.permute.xlu0 0
    %248 = vperm.xlu0 %247, %v210
    %v249 = vpop.permute.xlu0 %248
    %252 = vset.pattern.permute.xlu0 0
    %253 = vperm.xlu0 %252, %v211
    %v254 = vpop.permute.xlu0 %253
    %257 = vset.pattern.permute.xlu0 0
    %258 = vperm.xlu0 %257, %v212
    %v259 = vpop.permute.xlu0 %258
    %262 = vset.pattern.permute.xlu0 0
    %263 = vperm.xlu0 %262, %v213
    %v264 = vpop.permute.xlu0 %263
    %267 = vset.pattern.permute.xlu0 0
    %268 = vperm.xlu0 %267, %v214
    %v269 = vpop.permute.xlu0 %268
    %272 = vset.pattern.permute.xlu0 0
    %273 = vperm.xlu0 %272, %v215
    %v274 = vpop.permute.xlu0 %273
    %v288 = vunpack.c.l.b16 %v190
    %v289 = vunpack.c.l.b16 %v191
    %v290 = vunpack.c.l.b16 %v192
    %v291 = vunpack.c.l.b16 %v193
    %v292 = vunpack.c.l.b16 %v194
    %v293 = vunpack.c.l.b16 %v195
    %v294 = vunpack.c.l.b16 %v196
    %v295 = vunpack.c.l.b16 %v197
    %v296 = vunpack.c.l.b16 %v198
    %v297 = vunpack.c.l.b16 %v199
    %v298 = vunpack.c.l.b16 %v200
    %v299 = vunpack.c.l.b16 %v201
    %v300 = vpack.c.b16 %v289, %v288
    %v301 = vpack.c.b16 %v291, %v290
    %v302 = vpack.c.b16 %v293, %v292
    %v303 = vpack.c.b16 %v295, %v294
    %v304 = vpack.c.b16 %v297, %v296
    %v305 = vpack.c.b16 %v299, %v298
    %vm306 = vcmask 261120
    %v308 = vsel %vm306, %v300, 0
    %v311 = vsel %vm306, %v301, 0
    %v314 = vsel %vm306, %v302, 0
    %v317 = vsel %vm306, %v303, 0
    %v320 = vsel %vm306, %v304, 0
    %v323 = vsel %vm306, %v305, 0
    %325 = vmatprep.subr.bf16.mxu0 0
    %326 = vmatpush1.bf16.msra.mxu0 %v202
    %327 = vmatprep.subr.bf16.mxu0 0
    %328 = vmatpush1.bf16.msra.mxu0 %v203
    %329 = vmatprep.subr.bf16.mxu0 0
    %330 = vmatpush1.bf16.msra.mxu0 0
    %331 = vmatprep.subr.bf16.mxu0 0
    %332 = vmatpush1.bf16.msra.mxu0 0
    %333 = vmatprep.subr.bf16.mxu0 0
    %334 = vmatpush1.bf16.msra.mxu0 0
    %335 = vmatprep.subr.bf16.mxu0 0
    %336 = vmatpush1.bf16.msra.mxu0 0
    %337 = vmatprep.subr.bf16.mxu0 0
    %338 = vmatpush1.bf16.msra.mxu0 0
    %339 = vmatprep.subr.bf16.mxu0 0
    %340 = vmatpush1.bf16.msra.mxu0 0
    %341 = vmatprep.subr.bf16.mxu0 0
    %342 = vmatpush1.bf16.msra.mxu0 0
    %343 = vmatprep.subr.bf16.mxu0 0
    %344 = vmatpush1.bf16.msra.mxu0 0
    %345 = vmatprep.subr.bf16.mxu0 0
    %346 = vmatpush1.bf16.msra.mxu0 0
    %347 = vmatprep.subr.bf16.mxu0 0
    %348 = vmatpush1.bf16.msra.mxu0 0
    %349 = vmatprep.subr.bf16.mxu0 0
    %350 = vmatpush1.bf16.msra.mxu0 0
    %351 = vmatprep.subr.bf16.mxu0 0
    %352 = vmatpush1.bf16.msra.mxu0 0
    %353 = vmatprep.subr.bf16.mxu0 0
    %354 = vmatpush1.bf16.msra.mxu0 0
    %355 = vmatprep.subr.bf16.mxu0 0
    %356 = vmatpush1.bf16.msra.mxu0 0
    %357 = vmatprep.mubr.bf16.mxu0 0
    %358 = vmatmul.mubr.bf16.gmra.mrb[0].mxu0 %v308
    %v359 = vpop.f32.mrb[0].mxu0
    %v360 = vadd.f32 %v219, %v359
    %v361 = vpop.f32.mrb[0].mxu0
    %v362 = vpop.f32.mrb[0].mxu0
    %v363 = vadd.f32 %v224, %v362
    %v364 = vpop.f32.mrb[0].mxu0
    %365 = vmatprep.mubr.bf16.mxu0 0
    %366 = vmatmul.mubr.bf16.gmra.mrb[0].mxu0 %v311
    %v367 = vpop.f32.mrb[0].mxu0
    %v368 = vadd.f32 %v229, %v367
    %v369 = vpop.f32.mrb[0].mxu0
    %v370 = vpop.f32.mrb[0].mxu0
    %v371 = vadd.f32 %v234, %v370
    %v372 = vpop.f32.mrb[0].mxu0
    %373 = vmatprep.mubr.bf16.mxu0 0
    %374 = vmatmul.mubr.bf16.gmra.mrb[0].mxu0 %v314
    %v375 = vpop.f32.mrb[0].mxu0
    %v376 = vadd.f32 %v239, %v375
    %v377 = vpop.f32.mrb[0].mxu0
    %v378 = vpop.f32.mrb[0].mxu0
    %v379 = vadd.f32 %v244, %v378
    %v380 = vpop.f32.mrb[0].mxu0
    %381 = vmatprep.mubr.bf16.mxu0 0
    %382 = vmatmul.mubr.bf16.gmra.mrb[0].mxu0 %v317
    %v383 = vpop.f32.mrb[0].mxu0
    %v384 = vadd.f32 %v249, %v383
    %v385 = vpop.f32.mrb[0].mxu0
    %v386 = vpop.f32.mrb[0].mxu0
    %v387 = vadd.f32 %v254, %v386
    %v388 = vpop.f32.mrb[0].mxu0
    %389 = vmatprep.mubr.bf16.mxu0 0
    %390 = vmatmul.mubr.bf16.gmra.mrb[0].mxu0 %v320
    %v391 = vpop.f32.mrb[0].mxu0
    %v392 = vadd.f32 %v259, %v391
    %v393 = vpop.f32.mrb[0].mxu0
    %v394 = vpop.f32.mrb[0].mxu0
    %v395 = vadd.f32 %v264, %v394
    %v396 = vpop.f32.mrb[0].mxu0
    %397 = vmatprep.mubr.bf16.mxu0 0
    %398 = vmatmul.mubr.bf16.gmra.mrb[0].mxu0 %v323
    %v399 = vpop.f32.mrb[0].mxu0
    %v400 = vadd.f32 %v269, %v399
    %v401 = vpop.f32.mrb[0].mxu0
    %v402 = vpop.f32.mrb[0].mxu0
    %v403 = vadd.f32 %v274, %v402
    %v404 = vpop.f32.mrb[0].mxu0
    %405 = vdwg.mxu0
    %v406 = vld [vmem:[%s5] sm:$0xf]
    %v407 = vld [vmem:[%s5 + $0x4] sm:$0xf]
    %v408 = vld [vmem:[%s5 + $0x8] sm:$0xf]
    %v409 = vld [vmem:[%s5 + $0xc] sm:$0xf]
    %v410 = vld [vmem:[%s5 + $0x10] sm:$0xf]
    %v411 = vld [vmem:[%s5 + $0x14] sm:$0xf]
    %v412 = vld [vmem:[%s5 + $0x18] sm:$0xf]
    %v413 = vld [vmem:[%s5 + $0x1c] sm:$0xf]
    %v414 = vld [vmem:[%s5 + $0x20] sm:$0xf]
    %v415 = vld [vmem:[%s5 + $0x24] sm:$0xf]
    %v416 = vld [vmem:[%s5 + $0x28] sm:$0xf]
    %v417 = vld [vmem:[%s5 + $0x2c] sm:$0xf]
    %v418 = vld [vmem:[%s6] sm:$0xff]
    %v419 = vld [vmem:[%s6 + $0x8] sm:$0xff]
    %v420 = vld [vmem:[%s6 + $0x10] sm:$0xff]
    %v421 = vld [vmem:[%s6 + $0x18] sm:$0xff]
    %v422 = vld [vmem:[%s6 + $0x20] sm:$0xff]
    %v423 = vld [vmem:[%s6 + $0x28] sm:$0xff]
    %v424 = vld [vmem:[%s6 + $0x30] sm:$0xff]
    %v425 = vld [vmem:[%s6 + $0x38] sm:$0xff]
    %v426 = vld [vmem:[%s6 + $0x40] sm:$0xff]
    %v427 = vld [vmem:[%s6 + $0x48] sm:$0xff]
    %v428 = vld [vmem:[%s6 + $0x50] sm:$0xff]
    %v429 = vld [vmem:[%s6 + $0x58] sm:$0xff]
    %v430 = vld [vmem:[%s7] sm:$0xf]
    %v431 = vld [vmem:[%s7 + $0x4] sm:$0xf]
    %v432 = vld [vmem:[%s7 + $0x8] sm:$0xf]
    %v433 = vld [vmem:[%s7 + $0xc] sm:$0xf]
    %v434 = vld [vmem:[%s8] sm:$0xff]
    %v435 = vld [vmem:[%s8 + $0x8] sm:$0xff]
    %v436 = vld [vmem:[%s8 + $0x10] sm:$0xff]
    %v437 = vld [vmem:[%s8 + $0x18] sm:$0xff]
    %v438 = vld [vmem:[%s9] sm:$0xf]
    %v439 = vld [vmem:[%s10] sm:$0xff]
    %441 = vset.pattern.permute.xlu0 0
    %442 = vperm.xlu0 %441, %v418
    %v443 = vpop.permute.xlu0 %442
    %446 = vset.pattern.permute.xlu0 0
    %447 = vperm.xlu0 %446, %v419
    %v448 = vpop.permute.xlu0 %447
    %451 = vset.pattern.permute.xlu0 0
    %452 = vperm.xlu0 %451, %v420
    %v453 = vpop.permute.xlu0 %452
    %456 = vset.pattern.permute.xlu0 0
    %457 = vperm.xlu0 %456, %v421
    %v458 = vpop.permute.xlu0 %457
    %461 = vset.pattern.permute.xlu0 0
    %462 = vperm.xlu0 %461, %v422
    %v463 = vpop.permute.xlu0 %462
    %466 = vset.pattern.permute.xlu0 0
    %467 = vperm.xlu0 %466, %v423
    %v468 = vpop.permute.xlu0 %467
    %471 = vset.pattern.permute.xlu0 0
    %472 = vperm.xlu0 %471, %v424
    %v473 = vpop.permute.xlu0 %472
    %476 = vset.pattern.permute.xlu0 0
    %477 = vperm.xlu0 %476, %v425
    %v478 = vpop.permute.xlu0 %477
    %481 = vset.pattern.permute.xlu0 0
    %482 = vperm.xlu0 %481, %v426
    %v483 = vpop.permute.xlu0 %482
    %486 = vset.pattern.permute.xlu0 0
    %487 = vperm.xlu0 %486, %v427
    %v488 = vpop.permute.xlu0 %487
    %491 = vset.pattern.permute.xlu0 0
    %492 = vperm.xlu0 %491, %v428
    %v493 = vpop.permute.xlu0 %492
    %496 = vset.pattern.permute.xlu0 0
    %497 = vperm.xlu0 %496, %v429
    %v498 = vpop.permute.xlu0 %497
    %v512 = vunpack.c.l.b16 %v406
    %v513 = vunpack.c.l.b16 %v407
    %v514 = vunpack.c.l.b16 %v408
    %v515 = vunpack.c.l.b16 %v409
    %v516 = vunpack.c.l.b16 %v410
    %v517 = vunpack.c.l.b16 %v411
    %v518 = vunpack.c.l.b16 %v412
    %v519 = vunpack.c.l.b16 %v413
    %v520 = vunpack.c.l.b16 %v414
    %v521 = vunpack.c.l.b16 %v415
    %v522 = vunpack.c.l.b16 %v416
    %v523 = vunpack.c.l.b16 %v417
    %v524 = vpack.c.b16 %v513, %v512
    %v525 = vpack.c.b16 %v515, %v514
    %v526 = vpack.c.b16 %v517, %v516
    %v527 = vpack.c.b16 %v519, %v518
    %v528 = vpack.c.b16 %v521, %v520
    %v529 = vpack.c.b16 %v523, %v522
    %v531 = vsel %vm306, %v524, 0
    %v534 = vsel %vm306, %v525, 0
    %v537 = vsel %vm306, %v526, 0
    %v540 = vsel %vm306, %v527, 0
    %v543 = vsel %vm306, %v528, 0
    %v546 = vsel %vm306, %v529, 0
    %548 = vmatprep.subr.bf16.mxu0 0
    %549 = vmatpush1.bf16.msra.mxu0 0
    %550 = vmatprep.subr.bf16.mxu0 0
    %551 = vmatpush1.bf16.msra.mxu0 0
    %552 = vmatprep.subr.bf16.mxu0 0
    %553 = vmatpush1.bf16.msra.mxu0 0
    %554 = vmatprep.subr.bf16.mxu0 0
    %555 = vmatpush1.bf16.msra.mxu0 0
    %556 = vmatprep.subr.bf16.mxu0 0
    %557 = vmatpush1.bf16.msra.mxu0 0
    %558 = vmatprep.subr.bf16.mxu0 0
    %559 = vmatpush1.bf16.msra.mxu0 0
    %560 = vmatprep.subr.bf16.mxu0 0
    %561 = vmatpush1.bf16.msra.mxu0 0
    %562 = vmatprep.subr.bf16.mxu0 0
    %563 = vmatpush1.bf16.msra.mxu0 0
    %564 = vmatprep.subr.bf16.mxu0 0
    %565 = vmatpush1.bf16.msra.mxu0 0
    %566 = vmatprep.subr.bf16.mxu0 0
    %567 = vmatpush1.bf16.msra.mxu0 0
    %568 = vmatprep.subr.bf16.mxu0 0
    %569 = vmatpush1.bf16.msra.mxu0 0
    %570 = vmatprep.subr.bf16.mxu0 0
    %571 = vmatpush1.bf16.msra.mxu0 0
    %572 = vmatprep.subr.bf16.mxu0 0
    %573 = vmatpush1.bf16.msra.mxu0 0
    %574 = vmatprep.subr.bf16.mxu0 0
    %575 = vmatpush1.bf16.msra.mxu0 0
    %576 = vmatprep.subr.bf16.mxu0 0
    %577 = vmatpush1.bf16.msra.mxu0 0
    %578 = vmatprep.subr.bf16.mxu0 0
    %579 = vmatpush1.bf16.msra.mxu0 0
    %580 = vmatprep.mubr.bf16.mxu0 0
    %581 = vmatmul.mubr.bf16.gmra.mrb[0].mxu0 %v531
    %v582 = vpop.f32.mrb[0].mxu0
    %v583 = vadd.f32 %v443, %v582
    %v584 = vpop.f32.mrb[0].mxu0
    %v585 = vpop.f32.mrb[0].mxu0
    %v586 = vadd.f32 %v448, %v585
    %v587 = vpop.f32.mrb[0].mxu0
    %588 = vmatprep.mubr.bf16.mxu0 0
    %589 = vmatmul.mubr.bf16.gmra.mrb[0].mxu0 %v534
    %v590 = vpop.f32.mrb[0].mxu0
    %v591 = vadd.f32 %v453, %v590
    %v592 = vpop.f32.mrb[0].mxu0
    %v593 = vpop.f32.mrb[0].mxu0
    %v594 = vadd.f32 %v458, %v593
    %v595 = vpop.f32.mrb[0].mxu0
    %596 = vmatprep.mubr.bf16.mxu0 0
    %597 = vmatmul.mubr.bf16.gmra.mrb[0].mxu0 %v537
    %v598 = vpop.f32.mrb[0].mxu0
    %v599 = vadd.f32 %v463, %v598
    %v600 = vpop.f32.mrb[0].mxu0
    %v601 = vpop.f32.mrb[0].mxu0
    %v602 = vadd.f32 %v468, %v601
    %v603 = vpop.f32.mrb[0].mxu0
    %604 = vmatprep.mubr.bf16.mxu0 0
    %605 = vmatmul.mubr.bf16.gmra.mrb[0].mxu0 %v540
    %v606 = vpop.f32.mrb[0].mxu0
    %v607 = vadd.f32 %v473, %v606
    %v608 = vpop.f32.mrb[0].mxu0
    %v609 = vpop.f32.mrb[0].mxu0
    %v610 = vadd.f32 %v478, %v609
    %v611 = vpop.f32.mrb[0].mxu0
    %612 = vmatprep.mubr.bf16.mxu0 0
    %613 = vmatmul.mubr.bf16.gmra.mrb[0].mxu0 %v543
    %v614 = vpop.f32.mrb[0].mxu0
    %v615 = vadd.f32 %v483, %v614
    %v616 = vpop.f32.mrb[0].mxu0
    %v617 = vpop.f32.mrb[0].mxu0
    %v618 = vadd.f32 %v488, %v617
    %v619 = vpop.f32.mrb[0].mxu0
    %620 = vmatprep.mubr.bf16.mxu0 0
    %621 = vmatmul.mubr.bf16.gmra.mrb[0].mxu0 %v546
    %v622 = vpop.f32.mrb[0].mxu0
    %v623 = vadd.f32 %v493, %v622
    %v624 = vpop.f32.mrb[0].mxu0
    %v625 = vpop.f32.mrb[0].mxu0
    %v626 = vadd.f32 %v498, %v625
    %v627 = vpop.f32.mrb[0].mxu0
    %628 = vdwg.mxu0
    %v629 = vadd.f32 %v360, %v583
    %v630 = vadd.f32 %v363, %v586
    %v631 = vadd.f32 %v368, %v591
    %v632 = vadd.f32 %v371, %v594
    %v633 = vadd.f32 %v376, %v599
    %v634 = vadd.f32 %v379, %v602
    %v635 = vadd.f32 %v384, %v607
    %v636 = vadd.f32 %v387, %v610
    %v637 = vxor.u32 %v629, 2147483648
    %v638 = vxor.u32 %v630, 2147483648
    %v639 = vxor.u32 %v631, 2147483648
    %v640 = vxor.u32 %v632, 2147483648
    %v641 = vxor.u32 %v633, 2147483648
    %v642 = vxor.u32 %v634, 2147483648
    %v643 = vxor.u32 %v635, 2147483648
    %v644 = vxor.u32 %v636, 2147483648
    %v645 = vmul.f32 %v637, 1.442695
    %v646 = vpow.pop %v645
    %v647 = vmul.f32 %v638, 1.442695
    %v648 = vpow.pop %v647
    %v649 = vmul.f32 %v639, 1.442695
    %v650 = vpow.pop %v649
    %v651 = vmul.f32 %v640, 1.442695
    %v652 = vpow.pop %v651
    %v653 = vmul.f32 %v641, 1.442695
    %v654 = vpow.pop %v653
    %v655 = vmul.f32 %v642, 1.442695
    %v656 = vpow.pop %v655
    %v657 = vmul.f32 %v643, 1.442695
    %v658 = vpow.pop %v657
    %v659 = vmul.f32 %v644, 1.442695
    %v660 = vpow.pop %v659
    %v661 = vadd.f32 %v646, 1.0
    %v662 = vadd.f32 %v648, 1.0
    %v663 = vadd.f32 %v650, 1.0
    %v664 = vadd.f32 %v652, 1.0
    %v665 = vadd.f32 %v654, 1.0
    %v666 = vadd.f32 %v656, 1.0
    %v667 = vadd.f32 %v658, 1.0
    %v668 = vadd.f32 %v660, 1.0
    %v669 = vrcp.pop %v661
    %v670 = vmul.f32 1.0, %v669
    %v671 = vrcp.pop %v662
    %v672 = vmul.f32 1.0, %v671
    %v673 = vrcp.pop %v663
    %v674 = vmul.f32 1.0, %v673
    %v675 = vrcp.pop %v664
    %v676 = vmul.f32 1.0, %v675
    %v677 = vrcp.pop %v665
    %v678 = vmul.f32 1.0, %v677
    %v679 = vrcp.pop %v666
    %v680 = vmul.f32 1.0, %v679
    %v681 = vrcp.pop %v667
    %v682 = vmul.f32 1.0, %v681
    %v683 = vrcp.pop %v668
    %v684 = vmul.f32 1.0, %v683
    %v685 = vmul.f32 %v670, %v615
    %v686 = vmul.f32 %v672, %v618
    %v687 = vmul.f32 %v674, %v623
    %v688 = vmul.f32 %v676, %v626
    %v689 = vadd.f32 %v392, %v685
    %v690 = vadd.f32 %v395, %v686
    %v691 = vadd.f32 %v400, %v687
    %v692 = vadd.f32 %v403, %v688
    %v693 = vtanh.pop %v689
    %v694 = vtanh.pop %v690
    %v695 = vtanh.pop %v691
    %v696 = vtanh.pop %v692
    %v697 = vsub.f32 1.0, %v678
    %v698 = vsub.f32 1.0, %v680
    %v699 = vsub.f32 1.0, %v682
    %v700 = vsub.f32 1.0, %v684
    %v701 = vmul.f32 %v697, %v693
    %v702 = vmul.f32 %v698, %v694
    %v703 = vmul.f32 %v699, %v695
    %v704 = vmul.f32 %v700, %v696
    %v705 = vmul.f32 %v678, 0.0
    %v706 = vmul.f32 %v680, 0.0
    %v707 = vmul.f32 %v682, 0.0
    %v708 = vmul.f32 %v684, 0.0
    %v709 = vadd.f32 %v701, %v705
    %v710 = vadd.f32 %v702, %v706
    %v711 = vadd.f32 %v703, %v707
    %v712 = vadd.f32 %v704, %v708
    %vm713 = vcmp.gt.f32.partialorder %v709, 0.0
    %vm714 = vcmp.gt.f32.partialorder %v710, 0.0
    %vm715 = vcmp.gt.f32.partialorder %v711, 0.0
    %vm716 = vcmp.gt.f32.partialorder %v712, 0.0
    %v717 = vstv %s57
    %v718 = vmul.f32 %v717, %v709
    %v719 = vmul.f32 %v717, %v710
    %v720 = vmul.f32 %v717, %v711
    %v721 = vmul.f32 %v717, %v712
    %v722 = vsel %vm713, %v709, %v718
    %v723 = vsel %vm714, %v710, %v719
    %v724 = vsel %vm715, %v711, %v720
    %v725 = vsel %vm716, %v712, %v721
    %v726 = vpack.c.bf16 %v723, %v722
    %v727 = vpack.c.bf16 %v725, %v724
    %729 = vset.pattern.permute.xlu0 0
    %730 = vperm.xlu0 %729, %v434
    %v731 = vpop.permute.xlu0 %730
    %734 = vset.pattern.permute.xlu0 0
    %735 = vperm.xlu0 %734, %v435
    %v736 = vpop.permute.xlu0 %735
    %739 = vset.pattern.permute.xlu0 0
    %740 = vperm.xlu0 %739, %v436
    %v741 = vpop.permute.xlu0 %740
    %744 = vset.pattern.permute.xlu0 0
    %745 = vperm.xlu0 %744, %v437
    %v746 = vpop.permute.xlu0 %745
    %v752 = vunpack.c.l.b16 %v430
    %v753 = vunpack.c.l.b16 %v431
    %v754 = vunpack.c.l.b16 %v432
    %v755 = vunpack.c.l.b16 %v433
    %v756 = vpack.c.b16 %v753, %v752
    %v757 = vpack.c.b16 %v755, %v754
    %v759 = vsel %vm306, %v756, 0
    %v762 = vsel %vm306, %v757, 0
    %764 = vmatprep.subr.bf16.mxu0 0
    %765 = vmatpush1.bf16.msra.mxu0 %v726
    %766 = vmatprep.subr.bf16.mxu0 0
    %767 = vmatpush1.bf16.msra.mxu0 %v727
    %768 = vmatprep.subr.bf16.mxu0 0
    %769 = vmatpush1.bf16.msra.mxu0 0
    %770 = vmatprep.subr.bf16.mxu0 0
    %771 = vmatpush1.bf16.msra.mxu0 0
    %772 = vmatprep.subr.bf16.mxu0 0
    %773 = vmatpush1.bf16.msra.mxu0 0
    %774 = vmatprep.subr.bf16.mxu0 0
    %775 = vmatpush1.bf16.msra.mxu0 0
    %776 = vmatprep.subr.bf16.mxu0 0
    %777 = vmatpush1.bf16.msra.mxu0 0
    %778 = vmatprep.subr.bf16.mxu0 0
    %779 = vmatpush1.bf16.msra.mxu0 0
    %780 = vmatprep.subr.bf16.mxu0 0
    %781 = vmatpush1.bf16.msra.mxu0 0
    %782 = vmatprep.subr.bf16.mxu0 0
    %783 = vmatpush1.bf16.msra.mxu0 0
    %784 = vmatprep.subr.bf16.mxu0 0
    %785 = vmatpush1.bf16.msra.mxu0 0
    %786 = vmatprep.subr.bf16.mxu0 0
    %787 = vmatpush1.bf16.msra.mxu0 0
    %788 = vmatprep.subr.bf16.mxu0 0
    %789 = vmatpush1.bf16.msra.mxu0 0
    %790 = vmatprep.subr.bf16.mxu0 0
    %791 = vmatpush1.bf16.msra.mxu0 0
    %792 = vmatprep.subr.bf16.mxu0 0
    %793 = vmatpush1.bf16.msra.mxu0 0
    %794 = vmatprep.subr.bf16.mxu0 0
    %795 = vmatpush1.bf16.msra.mxu0 0
    %796 = vmatprep.mubr.bf16.mxu0 0
    %797 = vmatmul.mubr.bf16.gmra.mrb[0].mxu0 %v759
    %v798 = vpop.f32.mrb[0].mxu0
    %v799 = vadd.f32 %v731, %v798
    %v800 = vpop.f32.mrb[0].mxu0
    %v801 = vpop.f32.mrb[0].mxu0
    %v802 = vadd.f32 %v736, %v801
    %v803 = vpop.f32.mrb[0].mxu0
    %804 = vmatprep.mubr.bf16.mxu0 0
    %805 = vmatmul.mubr.bf16.gmra.mrb[0].mxu0 %v762
    %v806 = vpop.f32.mrb[0].mxu0
    %v807 = vadd.f32 %v741, %v806
    %v808 = vpop.f32.mrb[0].mxu0
    %v809 = vpop.f32.mrb[0].mxu0
    %v810 = vadd.f32 %v746, %v809
    %v811 = vpop.f32.mrb[0].mxu0
    %812 = vdwg.mxu0
    %vm813 = vcmp.gt.f32.partialorder %v799, 0.0
    %vm814 = vcmp.gt.f32.partialorder %v802, 0.0
    %vm815 = vcmp.gt.f32.partialorder %v807, 0.0
    %vm816 = vcmp.gt.f32.partialorder %v810, 0.0
    %v817 = vstv %s58
    %v818 = vmul.f32 %v817, %v799
    %v819 = vmul.f32 %v817, %v802
    %v820 = vmul.f32 %v817, %v807
    %v821 = vmul.f32 %v817, %v810
    %v822 = vsel %vm813, %v799, %v818
    %v823 = vsel %vm814, %v802, %v819
    %v824 = vsel %vm815, %v807, %v820
    %v825 = vsel %vm816, %v810, %v821
    %v826 = vpack.c.bf16 %v823, %v822
    %v827 = vpack.c.bf16 %v825, %v824
    %829 = vset.pattern.permute.xlu0 0
    %830 = vperm.xlu0 %829, %v439
    %v831 = vpop.permute.xlu0 %830
    %v834 = vsel %vm306, %v438, 0
    %836 = vmatprep.subr.bf16.mxu0 0
    %837 = vmatpush1.bf16.msra.mxu0 %v826
    %838 = vmatprep.subr.bf16.mxu0 0
    %839 = vmatpush1.bf16.msra.mxu0 %v827
    %840 = vmatprep.subr.bf16.mxu0 0
    %841 = vmatpush1.bf16.msra.mxu0 0
    %842 = vmatprep.subr.bf16.mxu0 0
    %843 = vmatpush1.bf16.msra.mxu0 0
    %844 = vmatprep.subr.bf16.mxu0 0
    %845 = vmatpush1.bf16.msra.mxu0 0
    %846 = vmatprep.subr.bf16.mxu0 0
    %847 = vmatpush1.bf16.msra.mxu0 0
    %848 = vmatprep.subr.bf16.mxu0 0
    %849 = vmatpush1.bf16.msra.mxu0 0
    %850 = vmatprep.subr.bf16.mxu0 0
    %851 = vmatpush1.bf16.msra.mxu0 0
    %852 = vmatprep.subr.bf16.mxu0 0
    %853 = vmatpush1.bf16.msra.mxu0 0
    %854 = vmatprep.subr.bf16.mxu0 0
    %855 = vmatpush1.bf16.msra.mxu0 0
    %856 = vmatprep.subr.bf16.mxu0 0
    %857 = vmatpush1.bf16.msra.mxu0 0
    %858 = vmatprep.subr.bf16.mxu0 0
    %859 = vmatpush1.bf16.msra.mxu0 0
    %860 = vmatprep.subr.bf16.mxu0 0
    %861 = vmatpush1.bf16.msra.mxu0 0
    %862 = vmatprep.subr.bf16.mxu0 0
    %863 = vmatpush1.bf16.msra.mxu0 0
    %864 = vmatprep.subr.bf16.mxu0 0
    %865 = vmatpush1.bf16.msra.mxu0 0
    %866 = vmatprep.subr.bf16.mxu0 0
    %867 = vmatpush1.bf16.msra.mxu0 0
    %868 = vmatprep.mubr.bf16.mxu0 0
    %869 = vmatmul.mubr.bf16.gmra.mrb[0].mxu0 %v834
    %v870 = vpop.f32.mrb[0].mxu0
    %v871 = vadd.f32 %v831, %v870
    %v872 = vpop.f32.mrb[0].mxu0
    %v873 = vpop.f32.mrb[0].mxu0
    %v874 = vpop.f32.mrb[0].mxu0
    %875 = vdwg.mxu0
    %876 = vst [vmem:[#allocation5] sm:$0xff] %v871
    %v877 = vpack.c.bf16 %v710, %v709
    %v878 = vpack.c.bf16 %v712, %v711
    %879 = vmatprep.subr.bf16.mxu0 0
    %880 = vmatpush1.bf16.msra.mxu0 %v877
    %881 = vmatprep.subr.bf16.mxu0 0
    %882 = vmatpush1.bf16.msra.mxu0 %v878
    %883 = vmatprep.subr.bf16.mxu0 0
    %884 = vmatpush1.bf16.msra.mxu0 0
    %885 = vmatprep.subr.bf16.mxu0 0
    %886 = vmatpush1.bf16.msra.mxu0 0
    %887 = vmatprep.subr.bf16.mxu0 0
    %888 = vmatpush1.bf16.msra.mxu0 0
    %889 = vmatprep.subr.bf16.mxu0 0
    %890 = vmatpush1.bf16.msra.mxu0 0
    %891 = vmatprep.subr.bf16.mxu0 0
    %892 = vmatpush1.bf16.msra.mxu0 0
    %893 = vmatprep.subr.bf16.mxu0 0
    %894 = vmatpush1.bf16.msra.mxu0 0
    %895 = vmatprep.subr.bf16.mxu0 0
    %896 = vmatpush1.bf16.msra.mxu0 0
    %897 = vmatprep.subr.bf16.mxu0 0
    %898 = vmatpush1.bf16.msra.mxu0 0
    %899 = vmatprep.subr.bf16.mxu0 0
    %900 = vmatpush1.bf16.msra.mxu0 0
    %901 = vmatprep.subr.bf16.mxu0 0
    %902 = vmatpush1.bf16.msra.mxu0 0
    %903 = vmatprep.subr.bf16.mxu0 0
    %904 = vmatpush1.bf16.msra.mxu0 0
    %905 = vmatprep.subr.bf16.mxu0 0
    %906 = vmatpush1.bf16.msra.mxu0 0
    %907 = vmatprep.subr.bf16.mxu0 0
    %908 = vmatpush1.bf16.msra.mxu0 0
    %909 = vmatprep.subr.bf16.mxu0 0
    %910 = vmatpush1.bf16.msra.mxu0 0
    %911 = vmatprep.mubr.bf16.mxu0 0
    %912 = vmatmul.mubr.bf16.gmra.mrb[0].mxu0 %v531
    %v913 = vpop.f32.mrb[0].mxu0
    %v914 = vadd.f32 %v443, %v913
    %v915 = vpop.f32.mrb[0].mxu0
    %v916 = vpop.f32.mrb[0].mxu0
    %v917 = vadd.f32 %v448, %v916
    %v918 = vpop.f32.mrb[0].mxu0
    %919 = vmatprep.mubr.bf16.mxu0 0
    %920 = vmatmul.mubr.bf16.gmra.mrb[0].mxu0 %v534
    %v921 = vpop.f32.mrb[0].mxu0
    %v922 = vadd.f32 %v453, %v921
    %v923 = vpop.f32.mrb[0].mxu0
    %v924 = vpop.f32.mrb[0].mxu0
    %v925 = vadd.f32 %v458, %v924
    %v926 = vpop.f32.mrb[0].mxu0
    %927 = vmatprep.mubr.bf16.mxu0 0
    %928 = vmatmul.mubr.bf16.gmra.mrb[0].mxu0 %v537
    %v929 = vpop.f32.mrb[0].mxu0
    %v930 = vadd.f32 %v463, %v929
    %v931 = vpop.f32.mrb[0].mxu0
    %v932 = vpop.f32.mrb[0].mxu0
    %v933 = vadd.f32 %v468, %v932
    %v934 = vpop.f32.mrb[0].mxu0
    %935 = vmatprep.mubr.bf16.mxu0 0
    %936 = vmatmul.mubr.bf16.gmra.mrb[0].mxu0 %v540
    %v937 = vpop.f32.mrb[0].mxu0
    %v938 = vadd.f32 %v473, %v937
    %v939 = vpop.f32.mrb[0].mxu0
    %v940 = vpop.f32.mrb[0].mxu0
    %v941 = vadd.f32 %v478, %v940
    %v942 = vpop.f32.mrb[0].mxu0
    %943 = vmatprep.mubr.bf16.mxu0 0
    %944 = vmatmul.mubr.bf16.gmra.mrb[0].mxu0 %v543
    %v945 = vpop.f32.mrb[0].mxu0
    %v946 = vadd.f32 %v483, %v945
    %v947 = vpop.f32.mrb[0].mxu0
    %v948 = vpop.f32.mrb[0].mxu0
    %v949 = vadd.f32 %v488, %v948
    %v950 = vpop.f32.mrb[0].mxu0
    %951 = vmatprep.mubr.bf16.mxu0 0
    %952 = vmatmul.mubr.bf16.gmra.mrb[0].mxu0 %v546
    %v953 = vpop.f32.mrb[0].mxu0
    %v954 = vadd.f32 %v493, %v953
    %v955 = vpop.f32.mrb[0].mxu0
    %v956 = vpop.f32.mrb[0].mxu0
    %v957 = vadd.f32 %v498, %v956
    %v958 = vpop.f32.mrb[0].mxu0
    %959 = vdwg.mxu0
    %v960 = vadd.f32 %v360, %v914
    %v961 = vadd.f32 %v363, %v917
    %v962 = vadd.f32 %v368, %v922
    %v963 = vadd.f32 %v371, %v925
    %v964 = vadd.f32 %v376, %v930
    %v965 = vadd.f32 %v379, %v933
    %v966 = vadd.f32 %v384, %v938
    %v967 = vadd.f32 %v387, %v941
    %v968 = vxor.u32 %v960, 2147483648
    %v969 = vxor.u32 %v961, 2147483648
    %v970 = vxor.u32 %v962, 2147483648
    %v971 = vxor.u32 %v963, 2147483648
    %v972 = vxor.u32 %v964, 2147483648
    %v973 = vxor.u32 %v965, 2147483648
    %v974 = vxor.u32 %v966, 2147483648
    %v975 = vxor.u32 %v967, 2147483648
    %v976 = vmul.f32 %v968, 1.442695
    %v977 = vpow.pop %v976
    %v978 = vmul.f32 %v969, 1.442695
    %v979 = vpow.pop %v978
    %v980 = vmul.f32 %v970, 1.442695
    %v981 = vpow.pop %v980
    %v982 = vmul.f32 %v971, 1.442695
    %v983 = vpow.pop %v982
    %v984 = vmul.f32 %v972, 1.442695
    %v985 = vpow.pop %v984
    %v986 = vmul.f32 %v973, 1.442695
    %v987 = vpow.pop %v986
    %v988 = vmul.f32 %v974, 1.442695
    %v989 = vpow.pop %v988
    %v990 = vmul.f32 %v975, 1.442695
    %v991 = vpow.pop %v990
    %v992 = vadd.f32 %v977, 1.0
    %v993 = vadd.f32 %v979, 1.0
    %v994 = vadd.f32 %v981, 1.0
    %v995 = vadd.f32 %v983, 1.0
    %v996 = vadd.f32 %v985, 1.0
    %v997 = vadd.f32 %v987, 1.0
    %v998 = vadd.f32 %v989, 1.0
    %v999 = vadd.f32 %v991, 1.0
    %v1000 = vrcp.pop %v992
    %v1001 = vmul.f32 1.0, %v1000
    %v1002 = vrcp.pop %v993
    %v1003 = vmul.f32 1.0, %v1002
    %v1004 = vrcp.pop %v994
    %v1005 = vmul.f32 1.0, %v1004
    %v1006 = vrcp.pop %v995
    %v1007 = vmul.f32 1.0, %v1006
    %v1008 = vrcp.pop %v996
    %v1009 = vmul.f32 1.0, %v1008
    %v1010 = vrcp.pop %v997
    %v1011 = vmul.f32 1.0, %v1010
    %v1012 = vrcp.pop %v998
    %v1013 = vmul.f32 1.0, %v1012
    %v1014 = vrcp.pop %v999
    %v1015 = vmul.f32 1.0, %v1014
    %v1016 = vmul.f32 %v1001, %v946
    %v1017 = vmul.f32 %v1003, %v949
    %v1018 = vmul.f32 %v1005, %v954
    %v1019 = vmul.f32 %v1007, %v957
    %v1020 = vadd.f32 %v392, %v1016
    %v1021 = vadd.f32 %v395, %v1017
    %v1022 = vadd.f32 %v400, %v1018
    %v1023 = vadd.f32 %v403, %v1019
    %v1024 = vtanh.pop %v1020
    %v1025 = vtanh.pop %v1021
    %v1026 = vtanh.pop %v1022
    %v1027 = vtanh.pop %v1023
    %v1028 = vsub.f32 1.0, %v1009
    %v1029 = vsub.f32 1.0, %v1011
    %v1030 = vsub.f32 1.0, %v1013
    %v1031 = vsub.f32 1.0, %v1015
    %v1032 = vmul.f32 %v1028, %v1024
    %v1033 = vmul.f32 %v1029, %v1025
    %v1034 = vmul.f32 %v1030, %v1026
    %v1035 = vmul.f32 %v1031, %v1027
    %v1036 = vmul.f32 %v1009, %v709
    %v1037 = vmul.f32 %v1011, %v710
    %v1038 = vmul.f32 %v1013, %v711
    %v1039 = vmul.f32 %v1015, %v712
    %v1040 = vadd.f32 %v1032, %v1036
    %v1041 = vadd.f32 %v1033, %v1037
    %v1042 = vadd.f32 %v1034, %v1038
    %v1043 = vadd.f32 %v1035, %v1039
    %vm1044 = vcmp.gt.f32.partialorder %v1040, 0.0
    %vm1045 = vcmp.gt.f32.partialorder %v1041, 0.0
    %vm1046 = vcmp.gt.f32.partialorder %v1042, 0.0
    %vm1047 = vcmp.gt.f32.partialorder %v1043, 0.0
    %v1048 = vmul.f32 %v717, %v1040
    %v1049 = vmul.f32 %v717, %v1041
    %v1050 = vmul.f32 %v717, %v1042
    %v1051 = vmul.f32 %v717, %v1043
    %v1052 = vsel %vm1044, %v1040, %v1048
    %v1053 = vsel %vm1045, %v1041, %v1049
    %v1054 = vsel %vm1046, %v1042, %v1050
    %v1055 = vsel %vm1047, %v1043, %v1051
    %v1056 = vpack.c.bf16 %v1053, %v1052
    %v1057 = vpack.c.bf16 %v1055, %v1054
    %1058 = vmatprep.subr.bf16.mxu0 0
    %1059 = vmatpush1.bf16.msra.mxu0 %v1056
    %1060 = vmatprep.subr.bf16.mxu0 0
    %1061 = vmatpush1.bf16.msra.mxu0 %v1057
    %1062 = vmatprep.subr.bf16.mxu0 0
    %1063 = vmatpush1.bf16.msra.mxu0 0
    %1064 = vmatprep.subr.bf16.mxu0 0
    %1065 = vmatpush1.bf16.msra.mxu0 0
    %1066 = vmatprep.subr.bf16.mxu0 0
    %1067 = vmatpush1.bf16.msra.mxu0 0
    %1068 = vmatprep.subr.bf16.mxu0 0
    %1069 = vmatpush1.bf16.msra.mxu0 0
    %1070 = vmatprep.subr.bf16.mxu0 0
    %1071 = vmatpush1.bf16.msra.mxu0 0
    %1072 = vmatprep.subr.bf16.mxu0 0
    %1073 = vmatpush1.bf16.msra.mxu0 0
    %1074 = vmatprep.subr.bf16.mxu0 0
    %1075 = vmatpush1.bf16.msra.mxu0 0
    %1076 = vmatprep.subr.bf16.mxu0 0
    %1077 = vmatpush1.bf16.msra.mxu0 0
    %1078 = vmatprep.subr.bf16.mxu0 0
    %1079 = vmatpush1.bf16.msra.mxu0 0
    %1080 = vmatprep.subr.bf16.mxu0 0
    %1081 = vmatpush1.bf16.msra.mxu0 0
    %1082 = vmatprep.subr.bf16.mxu0 0
    %1083 = vmatpush1.bf16.msra.mxu0 0
    %1084 = vmatprep.subr.bf16.mxu0 0
    %1085 = vmatpush1.bf16.msra.mxu0 0
    %1086 = vmatprep.subr.bf16.mxu0 0
    %1087 = vmatpush1.bf16.msra.mxu0 0
    %1088 = vmatprep.subr.bf16.mxu0 0
    %1089 = vmatpush1.bf16.msra.mxu0 0
    %1090 = vmatprep.mubr.bf16.mxu0 0
    %1091 = vmatmul.mubr.bf16.gmra.mrb[0].mxu0 %v759
    %v1092 = vpop.f32.mrb[0].mxu0
    %v1093 = vadd.f32 %v731, %v1092
    %v1094 = vpop.f32.mrb[0].mxu0
    %v1095 = vpop.f32.mrb[0].mxu0
    %v1096 = vadd.f32 %v736, %v1095
    %v1097 = vpop.f32.mrb[0].mxu0
    %1098 = vmatprep.mubr.bf16.mxu0 0
    %1099 = vmatmul.mubr.bf16.gmra.mrb[0].mxu0 %v762
    %v1100 = vpop.f32.mrb[0].mxu0
    %v1101 = vadd.f32 %v741, %v1100
    %v1102 = vpop.f32.mrb[0].mxu0
    %v1103 = vpop.f32.mrb[0].mxu0
    %v1104 = vadd.f32 %v746, %v1103
    %v1105 = vpop.f32.mrb[0].mxu0
    %1106 = vdwg.mxu0
    %vm1107 = vcmp.gt.f32.partialorder %v1093, 0.0
    %vm1108 = vcmp.gt.f32.partialorder %v1096, 0.0
    %vm1109 = vcmp.gt.f32.partialorder %v1101, 0.0
    %vm1110 = vcmp.gt.f32.partialorder %v1104, 0.0
    %v1111 = vmul.f32 %v817, %v1093
    %v1112 = vmul.f32 %v817, %v1096
    %v1113 = vmul.f32 %v817, %v1101
    %v1114 = vmul.f32 %v817, %v1104
    %v1115 = vsel %vm1107, %v1093, %v1111
    %v1116 = vsel %vm1108, %v1096, %v1112
    %v1117 = vsel %vm1109, %v1101, %v1113
    %v1118 = vsel %vm1110, %v1104, %v1114
    %v1119 = vpack.c.bf16 %v1116, %v1115
    %v1120 = vpack.c.bf16 %v1118, %v1117
    %1121 = vmatprep.subr.bf16.mxu0 0
    %1122 = vmatpush1.bf16.msra.mxu0 %v1119
    %1123 = vmatprep.subr.bf16.mxu0 0
    %1124 = vmatpush1.bf16.msra.mxu0 %v1120
    %1125 = vmatprep.subr.bf16.mxu0 0
    %1126 = vmatpush1.bf16.msra.mxu0 0
    %1127 = vmatprep.subr.bf16.mxu0 0
    %1128 = vmatpush1.bf16.msra.mxu0 0
    %1129 = vmatprep.subr.bf16.mxu0 0
    %1130 = vmatpush1.bf16.msra.mxu0 0
    %1131 = vmatprep.subr.bf16.mxu0 0
    %1132 = vmatpush1.bf16.msra.mxu0 0
    %1133 = vmatprep.subr.bf16.mxu0 0
    %1134 = vmatpush1.bf16.msra.mxu0 0
    %1135 = vmatprep.subr.bf16.mxu0 0
    %1136 = vmatpush1.bf16.msra.mxu0 0
    %1137 = vmatprep.subr.bf16.mxu0 0
    %1138 = vmatpush1.bf16.msra.mxu0 0
    %1139 = vmatprep.subr.bf16.mxu0 0
    %1140 = vmatpush1.bf16.msra.mxu0 0
    %1141 = vmatprep.subr.bf16.mxu0 0
    %1142 = vmatpush1.bf16.msra.mxu0 0
    %1143 = vmatprep.subr.bf16.mxu0 0
    %1144 = vmatpush1.bf16.msra.mxu0 0
    %1145 = vmatprep.subr.bf16.mxu0 0
    %1146 = vmatpush1.bf16.msra.mxu0 0
    %1147 = vmatprep.subr.bf16.mxu0 0
    %1148 = vmatpush1.bf16.msra.mxu0 0
    %1149 = vmatprep.subr.bf16.mxu0 0
    %1150 = vmatpush1.bf16.msra.mxu0 0
    %1151 = vmatprep.subr.bf16.mxu0 0
    %1152 = vmatpush1.bf16.msra.mxu0 0
    %1153 = vmatprep.mubr.bf16.mxu0 0
    %1154 = vmatmul.mubr.bf16.gmra.mrb[0].mxu0 %v834
    %v1155 = vpop.f32.mrb[0].mxu0
    %v1156 = vadd.f32 %v831, %v1155
    %v1157 = vpop.f32.mrb[0].mxu0
    %v1158 = vpop.f32.mrb[0].mxu0
    %v1159 = vpop.f32.mrb[0].mxu0
    %1160 = vdwg.mxu0
    %1161 = vst [vmem:[#allocation5 + $0x8] sm:$0xff] %v1156
    %v1162 = vpack.c.bf16 %v1041, %v1040
    %v1163 = vpack.c.bf16 %v1043, %v1042
    %1164 = vmatprep.subr.bf16.mxu0 0
    %1165 = vmatpush1.bf16.msra.mxu0 %v1162
    %1166 = vmatprep.subr.bf16.mxu0 0
    %1167 = vmatpush1.bf16.msra.mxu0 %v1163
    %1168 = vmatprep.subr.bf16.mxu0 0
    %1169 = vmatpush1.bf16.msra.mxu0 0
    %1170 = vmatprep.subr.bf16.mxu0 0
    %1171 = vmatpush1.bf16.msra.mxu0 0
    %1172 = vmatprep.subr.bf16.mxu0 0
    %1173 = vmatpush1.bf16.msra.mxu0 0
    %1174 = vmatprep.subr.bf16.mxu0 0
    %1175 = vmatpush1.bf16.msra.mxu0 0
    %1176 = vmatprep.subr.bf16.mxu0 0
    %1177 = vmatpush1.bf16.msra.mxu0 0
    %1178 = vmatprep.subr.bf16.mxu0 0
    %1179 = vmatpush1.bf16.msra.mxu0 0
    %1180 = vmatprep.subr.bf16.mxu0 0
    %1181 = vmatpush1.bf16.msra.mxu0 0
    %1182 = vmatprep.subr.bf16.mxu0 0
    %1183 = vmatpush1.bf16.msra.mxu0 0
    %1184 = vmatprep.subr.bf16.mxu0 0
    %1185 = vmatpush1.bf16.msra.mxu0 0
    %1186 = vmatprep.subr.bf16.mxu0 0
    %1187 = vmatpush1.bf16.msra.mxu0 0
    %1188 = vmatprep.subr.bf16.mxu0 0
    %1189 = vmatpush1.bf16.msra.mxu0 0
    %1190 = vmatprep.subr.bf16.mxu0 0
    %1191 = vmatpush1.bf16.msra.mxu0 0
    %1192 = vmatprep.subr.bf16.mxu0 0
    %1193 = vmatpush1.bf16.msra.mxu0 0
    %1194 = vmatprep.subr.bf16.mxu0 0
    %1195 = vmatpush1.bf16.msra.mxu0 0
    %1196 = vmatprep.mubr.bf16.mxu0 0
    %1197 = vmatmul.mubr.bf16.gmra.mrb[0].mxu0 %v531
    %v1198 = vpop.f32.mrb[0].mxu0
    %v1199 = vadd.f32 %v443, %v1198
    %v1200 = vpop.f32.mrb[0].mxu0
    %v1201 = vpop.f32.mrb[0].mxu0
    %v1202 = vadd.f32 %v448, %v1201
    %v1203 = vpop.f32.mrb[0].mxu0
    %1204 = vmatprep.mubr.bf16.mxu0 0
    %1205 = vmatmul.mubr.bf16.gmra.mrb[0].mxu0 %v534
    %v1206 = vpop.f32.mrb[0].mxu0
    %v1207 = vadd.f32 %v453, %v1206
    %v1208 = vpop.f32.mrb[0].mxu0
    %v1209 = vpop.f32.mrb[0].mxu0
    %v1210 = vadd.f32 %v458, %v1209
    %v1211 = vpop.f32.mrb[0].mxu0
    %1212 = vmatprep.mubr.bf16.mxu0 0
    %1213 = vmatmul.mubr.bf16.gmra.mrb[0].mxu0 %v537
    %v1214 = vpop.f32.mrb[0].mxu0
    %v1215 = vadd.f32 %v463, %v1214
    %v1216 = vpop.f32.mrb[0].mxu0
    %v1217 = vpop.f32.mrb[0].mxu0
    %v1218 = vadd.f32 %v468, %v1217
    %v1219 = vpop.f32.mrb[0].mxu0
    %1220 = vmatprep.mubr.bf16.mxu0 0
    %1221 = vmatmul.mubr.bf16.gmra.mrb[0].mxu0 %v540
    %v1222 = vpop.f32.mrb[0].mxu0
    %v1223 = vadd.f32 %v473, %v1222
    %v1224 = vpop.f32.mrb[0].mxu0
    %v1225 = vpop.f32.mrb[0].mxu0
    %v1226 = vadd.f32 %v478, %v1225
    %v1227 = vpop.f32.mrb[0].mxu0
    %1228 = vmatprep.mubr.bf16.mxu0 0
    %1229 = vmatmul.mubr.bf16.gmra.mrb[0].mxu0 %v543
    %v1230 = vpop.f32.mrb[0].mxu0
    %v1231 = vadd.f32 %v483, %v1230
    %v1232 = vpop.f32.mrb[0].mxu0
    %v1233 = vpop.f32.mrb[0].mxu0
    %v1234 = vadd.f32 %v488, %v1233
    %v1235 = vpop.f32.mrb[0].mxu0
    %1236 = vmatprep.mubr.bf16.mxu0 0
    %1237 = vmatmul.mubr.bf16.gmra.mrb[0].mxu0 %v546
    %v1238 = vpop.f32.mrb[0].mxu0
    %v1239 = vadd.f32 %v493, %v1238
    %v1240 = vpop.f32.mrb[0].mxu0
    %v1241 = vpop.f32.mrb[0].mxu0
    %v1242 = vadd.f32 %v498, %v1241
    %v1243 = vpop.f32.mrb[0].mxu0
    %1244 = vdwg.mxu0
    %v1245 = vadd.f32 %v360, %v1199
    %v1246 = vadd.f32 %v363, %v1202
    %v1247 = vadd.f32 %v368, %v1207
    %v1248 = vadd.f32 %v371, %v1210
    %v1249 = vadd.f32 %v376, %v1215
    %v1250 = vadd.f32 %v379, %v1218
    %v1251 = vadd.f32 %v384, %v1223
    %v1252 = vadd.f32 %v387, %v1226
    %v1253 = vxor.u32 %v1245, 2147483648
    %v1254 = vxor.u32 %v1246, 2147483648
    %v1255 = vxor.u32 %v1247, 2147483648
    %v1256 = vxor.u32 %v1248, 2147483648
    %v1257 = vxor.u32 %v1249, 2147483648
    %v1258 = vxor.u32 %v1250, 2147483648
    %v1259 = vxor.u32 %v1251, 2147483648
    %v1260 = vxor.u32 %v1252, 2147483648
    %v1261 = vmul.f32 %v1253, 1.442695
    %v1262 = vpow.pop %v1261
    %v1263 = vmul.f32 %v1254, 1.442695
    %v1264 = vpow.pop %v1263
    %v1265 = vmul.f32 %v1255, 1.442695
    %v1266 = vpow.pop %v1265
    %v1267 = vmul.f32 %v1256, 1.442695
    %v1268 = vpow.pop %v1267
    %v1269 = vmul.f32 %v1257, 1.442695
    %v1270 = vpow.pop %v1269
    %v1271 = vmul.f32 %v1258, 1.442695
    %v1272 = vpow.pop %v1271
    %v1273 = vmul.f32 %v1259, 1.442695
    %v1274 = vpow.pop %v1273
    %v1275 = vmul.f32 %v1260, 1.442695
    %v1276 = vpow.pop %v1275
    %v1277 = vadd.f32 %v1262, 1.0
    %v1278 = vadd.f32 %v1264, 1.0
    %v1279 = vadd.f32 %v1266, 1.0
    %v1280 = vadd.f32 %v1268, 1.0
    %v1281 = vadd.f32 %v1270, 1.0
    %v1282 = vadd.f32 %v1272, 1.0
    %v1283 = vadd.f32 %v1274, 1.0
    %v1284 = vadd.f32 %v1276, 1.0
    %v1285 = vrcp.pop %v1277
    %v1286 = vmul.f32 1.0, %v1285
    %v1287 = vrcp.pop %v1278
    %v1288 = vmul.f32 1.0, %v1287
    %v1289 = vrcp.pop %v1279
    %v1290 = vmul.f32 1.0, %v1289
    %v1291 = vrcp.pop %v1280
    %v1292 = vmul.f32 1.0, %v1291
    %v1293 = vrcp.pop %v1281
    %v1294 = vmul.f32 1.0, %v1293
    %v1295 = vrcp.pop %v1282
    %v1296 = vmul.f32 1.0, %v1295
    %v1297 = vrcp.pop %v1283
    %v1298 = vmul.f32 1.0, %v1297
    %v1299 = vrcp.pop %v1284
    %v1300 = vmul.f32 1.0, %v1299
    %v1301 = vmul.f32 %v1286, %v1231
    %v1302 = vmul.f32 %v1288, %v1234
    %v1303 = vmul.f32 %v1290, %v1239
    %v1304 = vmul.f32 %v1292, %v1242
    %v1305 = vadd.f32 %v392, %v1301
    %v1306 = vadd.f32 %v395, %v1302
    %v1307 = vadd.f32 %v400, %v1303
    %v1308 = vadd.f32 %v403, %v1304
    %v1309 = vtanh.pop %v1305
    %v1310 = vtanh.pop %v1306
    %v1311 = vtanh.pop %v1307
    %v1312 = vtanh.pop %v1308
    %v1313 = vsub.f32 1.0, %v1294
    %v1314 = vsub.f32 1.0, %v1296
    %v1315 = vsub.f32 1.0, %v1298
    %v1316 = vsub.f32 1.0, %v1300
    %v1317 = vmul.f32 %v1313, %v1309
    %v1318 = vmul.f32 %v1314, %v1310
    %v1319 = vmul.f32 %v1315, %v1311
    %v1320 = vmul.f32 %v1316, %v1312
    %v1321 = vmul.f32 %v1294, %v1040
    %v1322 = vmul.f32 %v1296, %v1041
    %v1323 = vmul.f32 %v1298, %v1042
    %v1324 = vmul.f32 %v1300, %v1043
    %v1325 = vadd.f32 %v1317, %v1321
    %v1326 = vadd.f32 %v1318, %v1322
    %v1327 = vadd.f32 %v1319, %v1323
    %v1328 = vadd.f32 %v1320, %v1324
    %vm1329 = vcmp.gt.f32.partialorder %v1325, 0.0
    %vm1330 = vcmp.gt.f32.partialorder %v1326, 0.0
    %vm1331 = vcmp.gt.f32.partialorder %v1327, 0.0
    %vm1332 = vcmp.gt.f32.partialorder %v1328, 0.0
    %v1333 = vmul.f32 %v717, %v1325
    %v1334 = vmul.f32 %v717, %v1326
    %v1335 = vmul.f32 %v717, %v1327
    %v1336 = vmul.f32 %v717, %v1328
    %v1337 = vsel %vm1329, %v1325, %v1333
    %v1338 = vsel %vm1330, %v1326, %v1334
    %v1339 = vsel %vm1331, %v1327, %v1335
    %v1340 = vsel %vm1332, %v1328, %v1336
    %v1341 = vpack.c.bf16 %v1338, %v1337
    %v1342 = vpack.c.bf16 %v1340, %v1339
    %1343 = vmatprep.subr.bf16.mxu0 0
    %1344 = vmatpush1.bf16.msra.mxu0 %v1341
    %1345 = vmatprep.subr.bf16.mxu0 0
    %1346 = vmatpush1.bf16.msra.mxu0 %v1342
    %1347 = vmatprep.subr.bf16.mxu0 0
    %1348 = vmatpush1.bf16.msra.mxu0 0
    %1349 = vmatprep.subr.bf16.mxu0 0
    %1350 = vmatpush1.bf16.msra.mxu0 0
    %1351 = vmatprep.subr.bf16.mxu0 0
    %1352 = vmatpush1.bf16.msra.mxu0 0
    %1353 = vmatprep.subr.bf16.mxu0 0
    %1354 = vmatpush1.bf16.msra.mxu0 0
    %1355 = vmatprep.subr.bf16.mxu0 0
    %1356 = vmatpush1.bf16.msra.mxu0 0
    %1357 = vmatprep.subr.bf16.mxu0 0
    %1358 = vmatpush1.bf16.msra.mxu0 0
    %1359 = vmatprep.subr.bf16.mxu0 0
    %1360 = vmatpush1.bf16.msra.mxu0 0
    %1361 = vmatprep.subr.bf16.mxu0 0
    %1362 = vmatpush1.bf16.msra.mxu0 0
    %1363 = vmatprep.subr.bf16.mxu0 0
    %1364 = vmatpush1.bf16.msra.mxu0 0
    %1365 = vmatprep.subr.bf16.mxu0 0
    %1366 = vmatpush1.bf16.msra.mxu0 0
    %1367 = vmatprep.subr.bf16.mxu0 0
    %1368 = vmatpush1.bf16.msra.mxu0 0
    %1369 = vmatprep.subr.bf16.mxu0 0
    %1370 = vmatpush1.bf16.msra.mxu0 0
    %1371 = vmatprep.subr.bf16.mxu0 0
    %1372 = vmatpush1.bf16.msra.mxu0 0
    %1373 = vmatprep.subr.bf16.mxu0 0
    %1374 = vmatpush1.bf16.msra.mxu0 0
    %1375 = vmatprep.mubr.bf16.mxu0 0
    %1376 = vmatmul.mubr.bf16.gmra.mrb[0].mxu0 %v759
    %v1377 = vpop.f32.mrb[0].mxu0
    %v1378 = vadd.f32 %v731, %v1377
    %v1379 = vpop.f32.mrb[0].mxu0
    %v1380 = vpop.f32.mrb[0].mxu0
    %v1381 = vadd.f32 %v736, %v1380
    %v1382 = vpop.f32.mrb[0].mxu0
    %1383 = vmatprep.mubr.bf16.mxu0 0
    %1384 = vmatmul.mubr.bf16.gmra.mrb[0].mxu0 %v762
    %v1385 = vpop.f32.mrb[0].mxu0
    %v1386 = vadd.f32 %v741, %v1385
    %v1387 = vpop.f32.mrb[0].mxu0
    %v1388 = vpop.f32.mrb[0].mxu0
    %v1389 = vadd.f32 %v746, %v1388
    %v1390 = vpop.f32.mrb[0].mxu0
    %1391 = vdwg.mxu0
    %vm1392 = vcmp.gt.f32.partialorder %v1378, 0.0
    %vm1393 = vcmp.gt.f32.partialorder %v1381, 0.0
    %vm1394 = vcmp.gt.f32.partialorder %v1386, 0.0
    %vm1395 = vcmp.gt.f32.partialorder %v1389, 0.0
    %v1396 = vmul.f32 %v817, %v1378
    %v1397 = vmul.f32 %v817, %v1381
    %v1398 = vmul.f32 %v817, %v1386
    %v1399 = vmul.f32 %v817, %v1389
    %v1400 = vsel %vm1392, %v1378, %v1396
    %v1401 = vsel %vm1393, %v1381, %v1397
    %v1402 = vsel %vm1394, %v1386, %v1398
    %v1403 = vsel %vm1395, %v1389, %v1399
    %v1404 = vpack.c.bf16 %v1401, %v1400
    %v1405 = vpack.c.bf16 %v1403, %v1402
    %1406 = vmatprep.subr.bf16.mxu0 0
    %1407 = vmatpush1.bf16.msra.mxu0 %v1404
    %1408 = vmatprep.subr.bf16.mxu0 0
    %1409 = vmatpush1.bf16.msra.mxu0 %v1405
    %1410 = vmatprep.subr.bf16.mxu0 0
    %1411 = vmatpush1.bf16.msra.mxu0 0
    %1412 = vmatprep.subr.bf16.mxu0 0
    %1413 = vmatpush1.bf16.msra.mxu0 0
    %1414 = vmatprep.subr.bf16.mxu0 0
    %1415 = vmatpush1.bf16.msra.mxu0 0
    %1416 = vmatprep.subr.bf16.mxu0 0
    %1417 = vmatpush1.bf16.msra.mxu0 0
    %1418 = vmatprep.subr.bf16.mxu0 0
    %1419 = vmatpush1.bf16.msra.mxu0 0
    %1420 = vmatprep.subr.bf16.mxu0 0
    %1421 = vmatpush1.bf16.msra.mxu0 0
    %1422 = vmatprep.subr.bf16.mxu0 0
    %1423 = vmatpush1.bf16.msra.mxu0 0
    %1424 = vmatprep.subr.bf16.mxu0 0
    %1425 = vmatpush1.bf16.msra.mxu0 0
    %1426 = vmatprep.subr.bf16.mxu0 0
    %1427 = vmatpush1.bf16.msra.mxu0 0
    %1428 = vmatprep.subr.bf16.mxu0 0
    %1429 = vmatpush1.bf16.msra.mxu0 0
    %1430 = vmatprep.subr.bf16.mxu0 0
    %1431 = vmatpush1.bf16.msra.mxu0 0
    %1432 = vmatprep.subr.bf16.mxu0 0
    %1433 = vmatpush1.bf16.msra.mxu0 0
    %1434 = vmatprep.subr.bf16.mxu0 0
    %1435 = vmatpush1.bf16.msra.mxu0 0
    %1436 = vmatprep.subr.bf16.mxu0 0
    %1437 = vmatpush1.bf16.msra.mxu0 0
    %1438 = vmatprep.mubr.bf16.mxu0 0
    %1439 = vmatmul.mubr.bf16.gmra.mrb[0].mxu0 %v834
    %v1440 = vpop.f32.mrb[0].mxu0
    %v1441 = vadd.f32 %v831, %v1440
    %v1442 = vpop.f32.mrb[0].mxu0
    %v1443 = vpop.f32.mrb[0].mxu0
    %v1444 = vpop.f32.mrb[0].mxu0
    %1445 = vdwg.mxu0
    %1446 = vst [vmem:[#allocation5 + $0x10] sm:$0xff] %v1441
    %v1447 = vpack.c.bf16 %v1326, %v1325
    %v1448 = vpack.c.bf16 %v1328, %v1327
    %1449 = vmatprep.subr.bf16.mxu0 0
    %1450 = vmatpush1.bf16.msra.mxu0 %v1447
    %1451 = vmatprep.subr.bf16.mxu0 0
    %1452 = vmatpush1.bf16.msra.mxu0 %v1448
    %1453 = vmatprep.subr.bf16.mxu0 0
    %1454 = vmatpush1.bf16.msra.mxu0 0
    %1455 = vmatprep.subr.bf16.mxu0 0
    %1456 = vmatpush1.bf16.msra.mxu0 0
    %1457 = vmatprep.subr.bf16.mxu0 0
    %1458 = vmatpush1.bf16.msra.mxu0 0
    %1459 = vmatprep.subr.bf16.mxu0 0
    %1460 = vmatpush1.bf16.msra.mxu0 0
    %1461 = vmatprep.subr.bf16.mxu0 0
    %1462 = vmatpush1.bf16.msra.mxu0 0
    %1463 = vmatprep.subr.bf16.mxu0 0
    %1464 = vmatpush1.bf16.msra.mxu0 0
    %1465 = vmatprep.subr.bf16.mxu0 0
    %1466 = vmatpush1.bf16.msra.mxu0 0
    %1467 = vmatprep.subr.bf16.mxu0 0
    %1468 = vmatpush1.bf16.msra.mxu0 0
    %1469 = vmatprep.subr.bf16.mxu0 0
    %1470 = vmatpush1.bf16.msra.mxu0 0
    %1471 = vmatprep.subr.bf16.mxu0 0
    %1472 = vmatpush1.bf16.msra.mxu0 0
    %1473 = vmatprep.subr.bf16.mxu0 0
    %1474 = vmatpush1.bf16.msra.mxu0 0
    %1475 = vmatprep.subr.bf16.mxu0 0
    %1476 = vmatpush1.bf16.msra.mxu0 0
    %1477 = vmatprep.subr.bf16.mxu0 0
    %1478 = vmatpush1.bf16.msra.mxu0 0
    %1479 = vmatprep.subr.bf16.mxu0 0
    %1480 = vmatpush1.bf16.msra.mxu0 0
    %1481 = vmatprep.mubr.bf16.mxu0 0
    %1482 = vmatmul.mubr.bf16.gmra.mrb[0].mxu0 %v531
    %v1483 = vpop.f32.mrb[0].mxu0
    %v1484 = vadd.f32 %v443, %v1483
    %v1485 = vpop.f32.mrb[0].mxu0
    %v1486 = vpop.f32.mrb[0].mxu0
    %v1487 = vadd.f32 %v448, %v1486
    %v1488 = vpop.f32.mrb[0].mxu0
    %1489 = vmatprep.mubr.bf16.mxu0 0
    %1490 = vmatmul.mubr.bf16.gmra.mrb[0].mxu0 %v534
    %v1491 = vpop.f32.mrb[0].mxu0
    %v1492 = vadd.f32 %v453, %v1491
    %v1493 = vpop.f32.mrb[0].mxu0
    %v1494 = vpop.f32.mrb[0].mxu0
    %v1495 = vadd.f32 %v458, %v1494
    %v1496 = vpop.f32.mrb[0].mxu0
    %1497 = vmatprep.mubr.bf16.mxu0 0
    %1498 = vmatmul.mubr.bf16.gmra.mrb[0].mxu0 %v537
    %v1499 = vpop.f32.mrb[0].mxu0
    %v1500 = vadd.f32 %v463, %v1499
    %v1501 = vpop.f32.mrb[0].mxu0
    %v1502 = vpop.f32.mrb[0].mxu0
    %v1503 = vadd.f32 %v468, %v1502
    %v1504 = vpop.f32.mrb[0].mxu0
    %1505 = vmatprep.mubr.bf16.mxu0 0
    %1506 = vmatmul.mubr.bf16.gmra.mrb[0].mxu0 %v540
    %v1507 = vpop.f32.mrb[0].mxu0
    %v1508 = vadd.f32 %v473, %v1507
    %v1509 = vpop.f32.mrb[0].mxu0
    %v1510 = vpop.f32.mrb[0].mxu0
    %v1511 = vadd.f32 %v478, %v1510
    %v1512 = vpop.f32.mrb[0].mxu0
    %1513 = vmatprep.mubr.bf16.mxu0 0
    %1514 = vmatmul.mubr.bf16.gmra.mrb[0].mxu0 %v543
    %v1515 = vpop.f32.mrb[0].mxu0
    %v1516 = vadd.f32 %v483, %v1515
    %v1517 = vpop.f32.mrb[0].mxu0
    %v1518 = vpop.f32.mrb[0].mxu0
    %v1519 = vadd.f32 %v488, %v1518
    %v1520 = vpop.f32.mrb[0].mxu0
    %1521 = vmatprep.mubr.bf16.mxu0 0
    %1522 = vmatmul.mubr.bf16.gmra.mrb[0].mxu0 %v546
    %v1523 = vpop.f32.mrb[0].mxu0
    %v1524 = vadd.f32 %v493, %v1523
    %v1525 = vpop.f32.mrb[0].mxu0
    %v1526 = vpop.f32.mrb[0].mxu0
    %v1527 = vadd.f32 %v498, %v1526
    %v1528 = vpop.f32.mrb[0].mxu0
    %1529 = vdwg.mxu0
    %v1530 = vadd.f32 %v360, %v1484
    %v1531 = vadd.f32 %v363, %v1487
    %v1532 = vadd.f32 %v368, %v1492
    %v1533 = vadd.f32 %v371, %v1495
    %v1534 = vadd.f32 %v376, %v1500
    %v1535 = vadd.f32 %v379, %v1503
    %v1536 = vadd.f32 %v384, %v1508
    %v1537 = vadd.f32 %v387, %v1511
    %v1538 = vxor.u32 %v1530, 2147483648
    %v1539 = vxor.u32 %v1531, 2147483648
    %v1540 = vxor.u32 %v1532, 2147483648
    %v1541 = vxor.u32 %v1533, 2147483648
    %v1542 = vxor.u32 %v1534, 2147483648
    %v1543 = vxor.u32 %v1535, 2147483648
    %v1544 = vxor.u32 %v1536, 2147483648
    %v1545 = vxor.u32 %v1537, 2147483648
    %v1546 = vmul.f32 %v1538, 1.442695
    %v1547 = vpow.pop %v1546
    %v1548 = vmul.f32 %v1539, 1.442695
    %v1549 = vpow.pop %v1548
    %v1550 = vmul.f32 %v1540, 1.442695
    %v1551 = vpow.pop %v1550
    %v1552 = vmul.f32 %v1541, 1.442695
    %v1553 = vpow.pop %v1552
    %v1554 = vmul.f32 %v1542, 1.442695
    %v1555 = vpow.pop %v1554
    %v1556 = vmul.f32 %v1543, 1.442695
    %v1557 = vpow.pop %v1556
    %v1558 = vmul.f32 %v1544, 1.442695
    %v1559 = vpow.pop %v1558
    %v1560 = vmul.f32 %v1545, 1.442695
    %v1561 = vpow.pop %v1560
    %v1562 = vadd.f32 %v1547, 1.0
    %v1563 = vadd.f32 %v1549, 1.0
    %v1564 = vadd.f32 %v1551, 1.0
    %v1565 = vadd.f32 %v1553, 1.0
    %v1566 = vadd.f32 %v1555, 1.0
    %v1567 = vadd.f32 %v1557, 1.0
    %v1568 = vadd.f32 %v1559, 1.0
    %v1569 = vadd.f32 %v1561, 1.0
    %v1570 = vrcp.pop %v1562
    %v1571 = vmul.f32 1.0, %v1570
    %v1572 = vrcp.pop %v1563
    %v1573 = vmul.f32 1.0, %v1572
    %v1574 = vrcp.pop %v1564
    %v1575 = vmul.f32 1.0, %v1574
    %v1576 = vrcp.pop %v1565
    %v1577 = vmul.f32 1.0, %v1576
    %v1578 = vrcp.pop %v1566
    %v1579 = vmul.f32 1.0, %v1578
    %v1580 = vrcp.pop %v1567
    %v1581 = vmul.f32 1.0, %v1580
    %v1582 = vrcp.pop %v1568
    %v1583 = vmul.f32 1.0, %v1582
    %v1584 = vrcp.pop %v1569
    %v1585 = vmul.f32 1.0, %v1584
    %v1586 = vmul.f32 %v1571, %v1516
    %v1587 = vmul.f32 %v1573, %v1519
    %v1588 = vmul.f32 %v1575, %v1524
    %v1589 = vmul.f32 %v1577, %v1527
    %v1590 = vadd.f32 %v392, %v1586
    %v1591 = vadd.f32 %v395, %v1587
    %v1592 = vadd.f32 %v400, %v1588
    %v1593 = vadd.f32 %v403, %v1589
    %v1594 = vtanh.pop %v1590
    %v1595 = vtanh.pop %v1591
    %v1596 = vtanh.pop %v1592
    %v1597 = vtanh.pop %v1593
    %v1598 = vsub.f32 1.0, %v1579
    %v1599 = vsub.f32 1.0, %v1581
    %v1600 = vsub.f32 1.0, %v1583
    %v1601 = vsub.f32 1.0, %v1585
    %v1602 = vmul.f32 %v1598, %v1594
    %v1603 = vmul.f32 %v1599, %v1595
    %v1604 = vmul.f32 %v1600, %v1596
    %v1605 = vmul.f32 %v1601, %v1597
    %v1606 = vmul.f32 %v1579, %v1325
    %v1607 = vmul.f32 %v1581, %v1326
    %v1608 = vmul.f32 %v1583, %v1327
    %v1609 = vmul.f32 %v1585, %v1328
    %v1610 = vadd.f32 %v1602, %v1606
    %v1611 = vadd.f32 %v1603, %v1607
    %v1612 = vadd.f32 %v1604, %v1608
    %v1613 = vadd.f32 %v1605, %v1609
    %vm1614 = vcmp.gt.f32.partialorder %v1610, 0.0
    %vm1615 = vcmp.gt.f32.partialorder %v1611, 0.0
    %vm1616 = vcmp.gt.f32.partialorder %v1612, 0.0
    %vm1617 = vcmp.gt.f32.partialorder %v1613, 0.0
    %v1618 = vmul.f32 %v717, %v1610
    %v1619 = vmul.f32 %v717, %v1611
    %v1620 = vmul.f32 %v717, %v1612
    %v1621 = vmul.f32 %v717, %v1613
    %v1622 = vsel %vm1614, %v1610, %v1618
    %v1623 = vsel %vm1615, %v1611, %v1619
    %v1624 = vsel %vm1616, %v1612, %v1620
    %v1625 = vsel %vm1617, %v1613, %v1621
    %v1626 = vpack.c.bf16 %v1623, %v1622
    %v1627 = vpack.c.bf16 %v1625, %v1624
    %1628 = vmatprep.subr.bf16.mxu0 0
    %1629 = vmatpush1.bf16.msra.mxu0 %v1626
    %1630 = vmatprep.subr.bf16.mxu0 0
    %1631 = vmatpush1.bf16.msra.mxu0 %v1627
    %1632 = vmatprep.subr.bf16.mxu0 0
    %1633 = vmatpush1.bf16.msra.mxu0 0
    %1634 = vmatprep.subr.bf16.mxu0 0
    %1635 = vmatpush1.bf16.msra.mxu0 0
    %1636 = vmatprep.subr.bf16.mxu0 0
    %1637 = vmatpush1.bf16.msra.mxu0 0
    %1638 = vmatprep.subr.bf16.mxu0 0
    %1639 = vmatpush1.bf16.msra.mxu0 0
    %1640 = vmatprep.subr.bf16.mxu0 0
    %1641 = vmatpush1.bf16.msra.mxu0 0
    %1642 = vmatprep.subr.bf16.mxu0 0
    %1643 = vmatpush1.bf16.msra.mxu0 0
    %1644 = vmatprep.subr.bf16.mxu0 0
    %1645 = vmatpush1.bf16.msra.mxu0 0
    %1646 = vmatprep.subr.bf16.mxu0 0
    %1647 = vmatpush1.bf16.msra.mxu0 0
    %1648 = vmatprep.subr.bf16.mxu0 0
    %1649 = vmatpush1.bf16.msra.mxu0 0
    %1650 = vmatprep.subr.bf16.mxu0 0
    %1651 = vmatpush1.bf16.msra.mxu0 0
    %1652 = vmatprep.subr.bf16.mxu0 0
    %1653 = vmatpush1.bf16.msra.mxu0 0
    %1654 = vmatprep.subr.bf16.mxu0 0
    %1655 = vmatpush1.bf16.msra.mxu0 0
    %1656 = vmatprep.subr.bf16.mxu0 0
    %1657 = vmatpush1.bf16.msra.mxu0 0
    %1658 = vmatprep.subr.bf16.mxu0 0
    %1659 = vmatpush1.bf16.msra.mxu0 0
    %1660 = vmatprep.mubr.bf16.mxu0 0
    %1661 = vmatmul.mubr.bf16.gmra.mrb[0].mxu0 %v759
    %v1662 = vpop.f32.mrb[0].mxu0
    %v1663 = vadd.f32 %v731, %v1662
    %v1664 = vpop.f32.mrb[0].mxu0
    %v1665 = vpop.f32.mrb[0].mxu0
    %v1666 = vadd.f32 %v736, %v1665
    %v1667 = vpop.f32.mrb[0].mxu0
    %1668 = vmatprep.mubr.bf16.mxu0 0
    %1669 = vmatmul.mubr.bf16.gmra.mrb[0].mxu0 %v762
    %v1670 = vpop.f32.mrb[0].mxu0
    %v1671 = vadd.f32 %v741, %v1670
    %v1672 = vpop.f32.mrb[0].mxu0
    %v1673 = vpop.f32.mrb[0].mxu0
    %v1674 = vadd.f32 %v746, %v1673
    %v1675 = vpop.f32.mrb[0].mxu0
    %1676 = vdwg.mxu0
    %vm1677 = vcmp.gt.f32.partialorder %v1663, 0.0
    %vm1678 = vcmp.gt.f32.partialorder %v1666, 0.0
    %vm1679 = vcmp.gt.f32.partialorder %v1671, 0.0
    %vm1680 = vcmp.gt.f32.partialorder %v1674, 0.0
    %v1681 = vmul.f32 %v817, %v1663
    %v1682 = vmul.f32 %v817, %v1666
    %v1683 = vmul.f32 %v817, %v1671
    %v1684 = vmul.f32 %v817, %v1674
    %v1685 = vsel %vm1677, %v1663, %v1681
    %v1686 = vsel %vm1678, %v1666, %v1682
    %v1687 = vsel %vm1679, %v1671, %v1683
    %v1688 = vsel %vm1680, %v1674, %v1684
    %v1689 = vpack.c.bf16 %v1686, %v1685
    %v1690 = vpack.c.bf16 %v1688, %v1687
    %1691 = vmatprep.subr.bf16.mxu0 0
    %1692 = vmatpush1.bf16.msra.mxu0 %v1689
    %1693 = vmatprep.subr.bf16.mxu0 0
    %1694 = vmatpush1.bf16.msra.mxu0 %v1690
    %1695 = vmatprep.subr.bf16.mxu0 0
    %1696 = vmatpush1.bf16.msra.mxu0 0
    %1697 = vmatprep.subr.bf16.mxu0 0
    %1698 = vmatpush1.bf16.msra.mxu0 0
    %1699 = vmatprep.subr.bf16.mxu0 0
    %1700 = vmatpush1.bf16.msra.mxu0 0
    %1701 = vmatprep.subr.bf16.mxu0 0
    %1702 = vmatpush1.bf16.msra.mxu0 0
    %1703 = vmatprep.subr.bf16.mxu0 0
    %1704 = vmatpush1.bf16.msra.mxu0 0
    %1705 = vmatprep.subr.bf16.mxu0 0
    %1706 = vmatpush1.bf16.msra.mxu0 0
    %1707 = vmatprep.subr.bf16.mxu0 0
    %1708 = vmatpush1.bf16.msra.mxu0 0
    %1709 = vmatprep.subr.bf16.mxu0 0
    %1710 = vmatpush1.bf16.msra.mxu0 0
    %1711 = vmatprep.subr.bf16.mxu0 0
    %1712 = vmatpush1.bf16.msra.mxu0 0
    %1713 = vmatprep.subr.bf16.mxu0 0
    %1714 = vmatpush1.bf16.msra.mxu0 0
    %1715 = vmatprep.subr.bf16.mxu0 0
    %1716 = vmatpush1.bf16.msra.mxu0 0
    %1717 = vmatprep.subr.bf16.mxu0 0
    %1718 = vmatpush1.bf16.msra.mxu0 0
    %1719 = vmatprep.subr.bf16.mxu0 0
    %1720 = vmatpush1.bf16.msra.mxu0 0
    %1721 = vmatprep.subr.bf16.mxu0 0
    %1722 = vmatpush1.bf16.msra.mxu0 0
    %1723 = vmatprep.mubr.bf16.mxu0 0
    %1724 = vmatmul.mubr.bf16.gmra.mrb[0].mxu0 %v834
    %v1725 = vpop.f32.mrb[0].mxu0
    %v1726 = vadd.f32 %v831, %v1725
    %v1727 = vpop.f32.mrb[0].mxu0
    %v1728 = vpop.f32.mrb[0].mxu0
    %v1729 = vpop.f32.mrb[0].mxu0
    %1730 = vdwg.mxu0
    %1731 = vst [vmem:[#allocation5 + $0x18] sm:$0xff] %v1726
    %v1732 = vpack.c.bf16 %v1611, %v1610
    %v1733 = vpack.c.bf16 %v1613, %v1612
    %1734 = vmatprep.subr.bf16.mxu0 0
    %1735 = vmatpush1.bf16.msra.mxu0 %v1732
    %1736 = vmatprep.subr.bf16.mxu0 0
    %1737 = vmatpush1.bf16.msra.mxu0 %v1733
    %1738 = vmatprep.subr.bf16.mxu0 0
    %1739 = vmatpush1.bf16.msra.mxu0 0
    %1740 = vmatprep.subr.bf16.mxu0 0
    %1741 = vmatpush1.bf16.msra.mxu0 0
    %1742 = vmatprep.subr.bf16.mxu0 0
    %1743 = vmatpush1.bf16.msra.mxu0 0
    %1744 = vmatprep.subr.bf16.mxu0 0
    %1745 = vmatpush1.bf16.msra.mxu0 0
    %1746 = vmatprep.subr.bf16.mxu0 0
    %1747 = vmatpush1.bf16.msra.mxu0 0
    %1748 = vmatprep.subr.bf16.mxu0 0
    %1749 = vmatpush1.bf16.msra.mxu0 0
    %1750 = vmatprep.subr.bf16.mxu0 0
    %1751 = vmatpush1.bf16.msra.mxu0 0
    %1752 = vmatprep.subr.bf16.mxu0 0
    %1753 = vmatpush1.bf16.msra.mxu0 0
    %1754 = vmatprep.subr.bf16.mxu0 0
    %1755 = vmatpush1.bf16.msra.mxu0 0
    %1756 = vmatprep.subr.bf16.mxu0 0
    %1757 = vmatpush1.bf16.msra.mxu0 0
    %1758 = vmatprep.subr.bf16.mxu0 0
    %1759 = vmatpush1.bf16.msra.mxu0 0
    %1760 = vmatprep.subr.bf16.mxu0 0
    %1761 = vmatpush1.bf16.msra.mxu0 0
    %1762 = vmatprep.subr.bf16.mxu0 0
    %1763 = vmatpush1.bf16.msra.mxu0 0
    %1764 = vmatprep.subr.bf16.mxu0 0
    %1765 = vmatpush1.bf16.msra.mxu0 0
    %1766 = vmatprep.mubr.bf16.mxu0 0
    %1767 = vmatmul.mubr.bf16.gmra.mrb[0].mxu0 %v531
    %v1768 = vpop.f32.mrb[0].mxu0
    %v1769 = vadd.f32 %v443, %v1768
    %v1770 = vpop.f32.mrb[0].mxu0
    %v1771 = vpop.f32.mrb[0].mxu0
    %v1772 = vadd.f32 %v448, %v1771
    %v1773 = vpop.f32.mrb[0].mxu0
    %1774 = vmatprep.mubr.bf16.mxu0 0
    %1775 = vmatmul.mubr.bf16.gmra.mrb[0].mxu0 %v534
    %v1776 = vpop.f32.mrb[0].mxu0
    %v1777 = vadd.f32 %v453, %v1776
    %v1778 = vpop.f32.mrb[0].mxu0
    %v1779 = vpop.f32.mrb[0].mxu0
    %v1780 = vadd.f32 %v458, %v1779
    %v1781 = vpop.f32.mrb[0].mxu0
    %1782 = vmatprep.mubr.bf16.mxu0 0
    %1783 = vmatmul.mubr.bf16.gmra.mrb[0].mxu0 %v537
    %v1784 = vpop.f32.mrb[0].mxu0
    %v1785 = vadd.f32 %v463, %v1784
    %v1786 = vpop.f32.mrb[0].mxu0
    %v1787 = vpop.f32.mrb[0].mxu0
    %v1788 = vadd.f32 %v468, %v1787
    %v1789 = vpop.f32.mrb[0].mxu0
    %1790 = vmatprep.mubr.bf16.mxu0 0
    %1791 = vmatmul.mubr.bf16.gmra.mrb[0].mxu0 %v540
    %v1792 = vpop.f32.mrb[0].mxu0
    %v1793 = vadd.f32 %v473, %v1792
    %v1794 = vpop.f32.mrb[0].mxu0
    %v1795 = vpop.f32.mrb[0].mxu0
    %v1796 = vadd.f32 %v478, %v1795
    %v1797 = vpop.f32.mrb[0].mxu0
    %1798 = vmatprep.mubr.bf16.mxu0 0
    %1799 = vmatmul.mubr.bf16.gmra.mrb[0].mxu0 %v543
    %v1800 = vpop.f32.mrb[0].mxu0
    %v1801 = vadd.f32 %v483, %v1800
    %v1802 = vpop.f32.mrb[0].mxu0
    %v1803 = vpop.f32.mrb[0].mxu0
    %v1804 = vadd.f32 %v488, %v1803
    %v1805 = vpop.f32.mrb[0].mxu0
    %1806 = vmatprep.mubr.bf16.mxu0 0
    %1807 = vmatmul.mubr.bf16.gmra.mrb[0].mxu0 %v546
    %v1808 = vpop.f32.mrb[0].mxu0
    %v1809 = vadd.f32 %v493, %v1808
    %v1810 = vpop.f32.mrb[0].mxu0
    %v1811 = vpop.f32.mrb[0].mxu0
    %v1812 = vadd.f32 %v498, %v1811
    %v1813 = vpop.f32.mrb[0].mxu0
    %1814 = vdwg.mxu0
    %v1815 = vadd.f32 %v360, %v1769
    %v1816 = vadd.f32 %v363, %v1772
    %v1817 = vadd.f32 %v368, %v1777
    %v1818 = vadd.f32 %v371, %v1780
    %v1819 = vadd.f32 %v376, %v1785
    %v1820 = vadd.f32 %v379, %v1788
    %v1821 = vadd.f32 %v384, %v1793
    %v1822 = vadd.f32 %v387, %v1796
    %v1823 = vxor.u32 %v1815, 2147483648
    %v1824 = vxor.u32 %v1816, 2147483648
    %v1825 = vxor.u32 %v1817, 2147483648
    %v1826 = vxor.u32 %v1818, 2147483648
    %v1827 = vxor.u32 %v1819, 2147483648
    %v1828 = vxor.u32 %v1820, 2147483648
    %v1829 = vxor.u32 %v1821, 2147483648
    %v1830 = vxor.u32 %v1822, 2147483648
    %v1831 = vmul.f32 %v1823, 1.442695
    %v1832 = vpow.pop %v1831
    %v1833 = vmul.f32 %v1824, 1.442695
    %v1834 = vpow.pop %v1833
    %v1835 = vmul.f32 %v1825, 1.442695
    %v1836 = vpow.pop %v1835
    %v1837 = vmul.f32 %v1826, 1.442695
    %v1838 = vpow.pop %v1837
    %v1839 = vmul.f32 %v1827, 1.442695
    %v1840 = vpow.pop %v1839
    %v1841 = vmul.f32 %v1828, 1.442695
    %v1842 = vpow.pop %v1841
    %v1843 = vmul.f32 %v1829, 1.442695
    %v1844 = vpow.pop %v1843
    %v1845 = vmul.f32 %v1830, 1.442695
    %v1846 = vpow.pop %v1845
    %v1847 = vadd.f32 %v1832, 1.0
    %v1848 = vadd.f32 %v1834, 1.0
    %v1849 = vadd.f32 %v1836, 1.0
    %v1850 = vadd.f32 %v1838, 1.0
    %v1851 = vadd.f32 %v1840, 1.0
    %v1852 = vadd.f32 %v1842, 1.0
    %v1853 = vadd.f32 %v1844, 1.0
    %v1854 = vadd.f32 %v1846, 1.0
    %v1855 = vrcp.pop %v1847
    %v1856 = vmul.f32 1.0, %v1855
    %v1857 = vrcp.pop %v1848
    %v1858 = vmul.f32 1.0, %v1857
    %v1859 = vrcp.pop %v1849
    %v1860 = vmul.f32 1.0, %v1859
    %v1861 = vrcp.pop %v1850
    %v1862 = vmul.f32 1.0, %v1861
    %v1863 = vrcp.pop %v1851
    %v1864 = vmul.f32 1.0, %v1863
    %v1865 = vrcp.pop %v1852
    %v1866 = vmul.f32 1.0, %v1865
    %v1867 = vrcp.pop %v1853
    %v1868 = vmul.f32 1.0, %v1867
    %v1869 = vrcp.pop %v1854
    %v1870 = vmul.f32 1.0, %v1869
    %v1871 = vmul.f32 %v1856, %v1801
    %v1872 = vmul.f32 %v1858, %v1804
    %v1873 = vmul.f32 %v1860, %v1809
    %v1874 = vmul.f32 %v1862, %v1812
    %v1875 = vadd.f32 %v392, %v1871
    %v1876 = vadd.f32 %v395, %v1872
    %v1877 = vadd.f32 %v400, %v1873
    %v1878 = vadd.f32 %v403, %v1874
    %v1879 = vtanh.pop %v1875
    %v1880 = vtanh.pop %v1876
    %v1881 = vtanh.pop %v1877
    %v1882 = vtanh.pop %v1878
    %v1883 = vsub.f32 1.0, %v1864
    %v1884 = vsub.f32 1.0, %v1866
    %v1885 = vsub.f32 1.0, %v1868
    %v1886 = vsub.f32 1.0, %v1870
    %v1887 = vmul.f32 %v1883, %v1879
    %v1888 = vmul.f32 %v1884, %v1880
    %v1889 = vmul.f32 %v1885, %v1881
    %v1890 = vmul.f32 %v1886, %v1882
    %v1891 = vmul.f32 %v1864, %v1610
    %v1892 = vmul.f32 %v1866, %v1611
    %v1893 = vmul.f32 %v1868, %v1612
    %v1894 = vmul.f32 %v1870, %v1613
    %v1895 = vadd.f32 %v1887, %v1891
    %v1896 = vadd.f32 %v1888, %v1892
    %v1897 = vadd.f32 %v1889, %v1893
    %v1898 = vadd.f32 %v1890, %v1894
    %vm1899 = vcmp.gt.f32.partialorder %v1895, 0.0
    %vm1900 = vcmp.gt.f32.partialorder %v1896, 0.0
    %vm1901 = vcmp.gt.f32.partialorder %v1897, 0.0
    %vm1902 = vcmp.gt.f32.partialorder %v1898, 0.0
    %v1903 = vmul.f32 %v717, %v1895
    %v1904 = vmul.f32 %v717, %v1896
    %v1905 = vmul.f32 %v717, %v1897
    %v1906 = vmul.f32 %v717, %v1898
    %v1907 = vsel %vm1899, %v1895, %v1903
    %v1908 = vsel %vm1900, %v1896, %v1904
    %v1909 = vsel %vm1901, %v1897, %v1905
    %v1910 = vsel %vm1902, %v1898, %v1906
    %v1911 = vpack.c.bf16 %v1908, %v1907
    %v1912 = vpack.c.bf16 %v1910, %v1909
    %1913 = vmatprep.subr.bf16.mxu0 0
    %1914 = vmatpush1.bf16.msra.mxu0 %v1911
    %1915 = vmatprep.subr.bf16.mxu0 0
    %1916 = vmatpush1.bf16.msra.mxu0 %v1912
    %1917 = vmatprep.subr.bf16.mxu0 0
    %1918 = vmatpush1.bf16.msra.mxu0 0
    %1919 = vmatprep.subr.bf16.mxu0 0
    %1920 = vmatpush1.bf16.msra.mxu0 0
    %1921 = vmatprep.subr.bf16.mxu0 0
    %1922 = vmatpush1.bf16.msra.mxu0 0
    %1923 = vmatprep.subr.bf16.mxu0 0
    %1924 = vmatpush1.bf16.msra.mxu0 0
    %1925 = vmatprep.subr.bf16.mxu0 0
    %1926 = vmatpush1.bf16.msra.mxu0 0
    %1927 = vmatprep.subr.bf16.mxu0 0
    %1928 = vmatpush1.bf16.msra.mxu0 0
    %1929 = vmatprep.subr.bf16.mxu0 0
    %1930 = vmatpush1.bf16.msra.mxu0 0
    %1931 = vmatprep.subr.bf16.mxu0 0
    %1932 = vmatpush1.bf16.msra.mxu0 0
    %1933 = vmatprep.subr.bf16.mxu0 0
    %1934 = vmatpush1.bf16.msra.mxu0 0
    %1935 = vmatprep.subr.bf16.mxu0 0
    %1936 = vmatpush1.bf16.msra.mxu0 0
    %1937 = vmatprep.subr.bf16.mxu0 0
    %1938 = vmatpush1.bf16.msra.mxu0 0
    %1939 = vmatprep.subr.bf16.mxu0 0
    %1940 = vmatpush1.bf16.msra.mxu0 0
    %1941 = vmatprep.subr.bf16.mxu0 0
    %1942 = vmatpush1.bf16.msra.mxu0 0
    %1943 = vmatprep.subr.bf16.mxu0 0
    %1944 = vmatpush1.bf16.msra.mxu0 0
    %1945 = vmatprep.mubr.bf16.mxu0 0
    %1946 = vmatmul.mubr.bf16.gmra.mrb[0].mxu0 %v759
    %v1947 = vpop.f32.mrb[0].mxu0
    %v1948 = vadd.f32 %v731, %v1947
    %v1949 = vpop.f32.mrb[0].mxu0
    %v1950 = vpop.f32.mrb[0].mxu0
    %v1951 = vadd.f32 %v736, %v1950
    %v1952 = vpop.f32.mrb[0].mxu0
    %1953 = vmatprep.mubr.bf16.mxu0 0
    %1954 = vmatmul.mubr.bf16.gmra.mrb[0].mxu0 %v762
    %v1955 = vpop.f32.mrb[0].mxu0
    %v1956 = vadd.f32 %v741, %v1955
    %v1957 = vpop.f32.mrb[0].mxu0
    %v1958 = vpop.f32.mrb[0].mxu0
    %v1959 = vadd.f32 %v746, %v1958
    %v1960 = vpop.f32.mrb[0].mxu0
    %1961 = vdwg.mxu0
    %vm1962 = vcmp.gt.f32.partialorder %v1948, 0.0
    %vm1963 = vcmp.gt.f32.partialorder %v1951, 0.0
    %vm1964 = vcmp.gt.f32.partialorder %v1956, 0.0
    %vm1965 = vcmp.gt.f32.partialorder %v1959, 0.0
    %v1966 = vmul.f32 %v817, %v1948
    %v1967 = vmul.f32 %v817, %v1951
    %v1968 = vmul.f32 %v817, %v1956
    %v1969 = vmul.f32 %v817, %v1959
    %v1970 = vsel %vm1962, %v1948, %v1966
    %v1971 = vsel %vm1963, %v1951, %v1967
    %v1972 = vsel %vm1964, %v1956, %v1968
    %v1973 = vsel %vm1965, %v1959, %v1969
    %v1974 = vpack.c.bf16 %v1971, %v1970
    %v1975 = vpack.c.bf16 %v1973, %v1972
    %1976 = vmatprep.subr.bf16.mxu0 0
    %1977 = vmatpush1.bf16.msra.mxu0 %v1974
    %1978 = vmatprep.subr.bf16.mxu0 0
    %1979 = vmatpush1.bf16.msra.mxu0 %v1975
    %1980 = vmatprep.subr.bf16.mxu0 0
    %1981 = vmatpush1.bf16.msra.mxu0 0
    %1982 = vmatprep.subr.bf16.mxu0 0
    %1983 = vmatpush1.bf16.msra.mxu0 0
    %1984 = vmatprep.subr.bf16.mxu0 0
    %1985 = vmatpush1.bf16.msra.mxu0 0
    %1986 = vmatprep.subr.bf16.mxu0 0
    %1987 = vmatpush1.bf16.msra.mxu0 0
    %1988 = vmatprep.subr.bf16.mxu0 0
    %1989 = vmatpush1.bf16.msra.mxu0 0
    %1990 = vmatprep.subr.bf16.mxu0 0
    %1991 = vmatpush1.bf16.msra.mxu0 0
    %1992 = vmatprep.subr.bf16.mxu0 0
    %1993 = vmatpush1.bf16.msra.mxu0 0
    %1994 = vmatprep.subr.bf16.mxu0 0
    %1995 = vmatpush1.bf16.msra.mxu0 0
    %1996 = vmatprep.subr.bf16.mxu0 0
    %1997 = vmatpush1.bf16.msra.mxu0 0
    %1998 = vmatprep.subr.bf16.mxu0 0
    %1999 = vmatpush1.bf16.msra.mxu0 0
    %2000 = vmatprep.subr.bf16.mxu0 0
    %2001 = vmatpush1.bf16.msra.mxu0 0
    %2002 = vmatprep.subr.bf16.mxu0 0
    %2003 = vmatpush1.bf16.msra.mxu0 0
    %2004 = vmatprep.subr.bf16.mxu0 0
    %2005 = vmatpush1.bf16.msra.mxu0 0
    %2006 = vmatprep.subr.bf16.mxu0 0
    %2007 = vmatpush1.bf16.msra.mxu0 0
    %2008 = vmatprep.mubr.bf16.mxu0 0
    %2009 = vmatmul.mubr.bf16.gmra.mrb[0].mxu0 %v834
    %v2010 = vpop.f32.mrb[0].mxu0
    %v2011 = vadd.f32 %v831, %v2010
    %v2012 = vpop.f32.mrb[0].mxu0
    %v2013 = vpop.f32.mrb[0].mxu0
    %v2014 = vpop.f32.mrb[0].mxu0
    %2015 = vdwg.mxu0
    %2016 = vst [vmem:[#allocation5 + $0x20] sm:$0xff] %v2011
    // Predicated region
    $region54: #{tpu_custom_call.1} parent=1 // pred_check
      _
    $region55: #{tpu_custom_call.1} parent=1 // pred_check_branch
      %2018 = sbr.rel (0) target = $region57
    $region56: #{tpu_custom_call.1} parent=1 // pred_region
      %s2020 = ssub.s32 640, 640
      %2021 = vsyncadd [#allocation3], %s2020
      %s2022 = sshll.u32 [#allocation5], 4
      %s2023 = int_to_ptr.vmem [resolvable:$true] %s2022
      %2028 = dma.vmem_to_hbm [thread:$0]  %s2023, 640, %s12, [#allocation3], 128, 128, 8
    $region57: #{tpu_custom_call.1} parent=1 // pred_fallthru
      _
    // Predicated region
    $region58: #{tpu_custom_call.1} parent=1 // pred_check
      _
    $region59: #{tpu_custom_call.1} parent=1 // pred_check_branch
      %2030 = sbr.rel (0) target = $region61
    $region60: #{tpu_custom_call.1} parent=1 // pred_region
      %2031 = dma.done [#allocation3], 640
    $region61: #{tpu_custom_call.1} parent=1 // pred_fallthru
      _
    %2032 = vsyncpa [#allocation3], 1
    %2033 = vsyncpa [#allocation4], 1

</llo_original>
